<compile_context>
chip_gen: v6e
topology: v6e:2x2x1
jax: 0.10.0
libtpu: 0.0.40
codegen_flags: <defaults>
</compile_context>

<pallas_src>
import numpy as np
import jax
import jax.numpy as jnp
from jax.experimental import pallas as pl
from jax.experimental.pallas import tpu as pltpu

K = 5      # kernel_size
PAD = 2    # padding (circular), stride = 1

# bf16 MXU inputs (keep preferred_element_type=f32) roughly double matmul
# throughput on v6e/v7x and halve weight bytes; left at f32 so the strict
# 2e-5 correctness check holds and v5e's f32-only VPU/EUP path stays clean.
MXU_INPUT_DTYPE = jnp.float32


# ---------------------------------------------------------------------------
# Kernel
# ---------------------------------------------------------------------------
def _circ_conv(h, a_ref):
    """Circular 1-D conv on a whole (R, L) slab, R = b_tile*C, rows = n*C + c.

    a_ref holds K block-diagonal weight matrices, shape (K, R, R):
        a[k, n*Cout + o, m*Cin + ci] = (n == m) * w[o, ci, k]
    so  y_slab = sum_k a[k] @ roll(h_slab, PAD - k, lanes)
    computes, per sample n:
        y[n, o, l] = sum_{ci,k} w[o, ci, k] * h[n, ci, (l + k - PAD) % L]
    """
    _, L = h.shape
    acc = None
    for k in range(K):                              # static unroll, K = 5
        s = (PAD - k) % L                           # static >= 0; jnp.roll convention
        tap = h if s == 0 else pltpu.roll(h, s, 1)  # XLU lane rotate (per-row circular)
        part = jnp.dot(a_ref[k].astype(MXU_INPUT_DTYPE),
                       tap.astype(MXU_INPUT_DTYPE),
                       preferred_element_type=jnp.float32)
        acc = part if acc is None else acc + part
    return acc                                      # (R, L) float32


def resblock_kernel(x_ref, s1_ref, b1_ref, a1_ref, s2_ref, b2_ref, a2_ref,
                    o_ref):
    x = x_ref[...].astype(jnp.float32)              # (R, L) slab, rows = n*C + c
    h = jnp.maximum(x * s1_ref[...] + b1_ref[...], 0.0)   # bn1 + relu (f32 VPU)
    y = _circ_conv(h, a1_ref)                       # conv1 (circular)
    h2 = jnp.maximum(y * s2_ref[...] + b2_ref[...], 0.0)  # bn2 + relu
    y2 = _circ_conv(h2, a2_ref)                     # conv2 (circular)
    o_ref[...] = (y2 + x).astype(o_ref.dtype)       # residual; one unmasked store


# ---------------------------------------------------------------------------
# Wrapper
# ---------------------------------------------------------------------------
def _pick_b_tile(N, C, L, itemsize=4, max_slab_bytes=2 << 20):
    """Largest batch tile giving >= 2 grid steps (v7x megacore), 8-aligned
    sublane rows, and a VMEM-friendly slab; fallback: one full-batch step."""
    aligned = [N // s for s in range(2, N + 1)
               if N % s == 0 and ((N // s) * C) % 8 == 0]
    for bt in aligned:                              # decreasing bt = fewest steps
        if bt * C * L * itemsize <= max_slab_bytes:
            return bt
    return aligned[-1] if aligned else N


def resblock_forward(x_ncl, params, *, b_tile=None, eps=1e-5):
    """x_ncl: (N, C, L) float32 in PyTorch Conv1d layout (reshape to the slab
    layout is free / contiguous)."""
    N, Cin, L = x_ncl.shape
    Cout = params["w1"].shape[0]
    assert Cin == Cout, "residual add requires in_channels == out_channels"
    C = Cin
    if b_tile is None:
        b_tile = _pick_b_tile(N, C, L, x_ncl.dtype.itemsize)
    assert N % b_tile == 0, "batch must be divisible by the batch tile"
    assert (b_tile * C) % 8 == 0 or b_tile == N
    R = b_tile * C                                  # slab rows per grid step

    # Fold eval-mode BatchNorm into per-channel scale/shift, tiled to slab rows.
    def fold(bn):
        g, beta, mean, var = bn
        s = g / jnp.sqrt(var + eps)
        return s, beta - mean * s

    s1, t1 = fold(params["bn1"])
    s2, t2 = fold(params["bn2"])
    s1c, t1c = jnp.tile(s1, b_tile)[:, None], jnp.tile(t1, b_tile)[:, None]
    s2c, t2c = jnp.tile(s2, b_tile)[:, None], jnp.tile(t2, b_tile)[:, None]

    # PyTorch conv weight (Cout, Cin, K) -> K block-diagonal (R, R) matrices
    # (one per tap) so one matmul covers every sample in the slab.
    eye = jnp.eye(b_tile, dtype=x_ncl.dtype)

    def blockdiag(w):
        wk = jnp.transpose(w, (2, 0, 1))            # (K, Cout, Cin)
        a = jnp.einsum("nm,koi->knomi", eye, wk)    # (K, b, Cout, b, Cin)
        return a.reshape(K, b_tile * Cout, b_tile * Cin)

    a1 = blockdiag(params["w1"])
    a2 = blockdiag(params["w2"])

    x_flat = x_ncl.reshape(N * C, L)                # free, contiguous

    flops = 2 * (2 * N * Cout * Cin * K * L)        # two convs (algorithmic)
    bytes_accessed = int(
        (2 * N * C * L + a1.size + a2.size + 4 * R) * x_ncl.dtype.itemsize)

    out_flat = pl.pallas_call(
        resblock_kernel,
        out_shape=jax.ShapeDtypeStruct((N * C, L), x_ncl.dtype),
        grid_spec=pltpu.PrefetchScalarGridSpec(
            num_scalar_prefetch=0,
            grid=(N // b_tile,),
            in_specs=[
                pl.BlockSpec((R, L), lambda i: (i, 0)),         # x slab
                pl.BlockSpec((R, 1), lambda i: (0, 0)),         # bn1 scale
                pl.BlockSpec((R, 1), lambda i: (0, 0)),         # bn1 shift
                pl.BlockSpec((K, R, R), lambda i: (0, 0, 0)),   # conv1 blockdiag w
                pl.BlockSpec((R, 1), lambda i: (0, 0)),         # bn2 scale
                pl.BlockSpec((R, 1), lambda i: (0, 0)),         # bn2 shift
                pl.BlockSpec((K, R, R), lambda i: (0, 0, 0)),   # conv2 blockdiag w
            ],
            out_specs=pl.BlockSpec((R, L), lambda i: (i, 0)),
        ),
        compiler_params=pltpu.CompilerParams(
            dimension_semantics=("parallel",)),
        cost_estimate=pl.CostEstimate(
            flops=flops, transcendentals=0, bytes_accessed=bytes_accessed),
    )(x_flat, s1c, t1c, a1, s2c, t2c, a2)

    return out_flat.reshape(N, C, L)


# ---------------------------------------------------------------------------
# Pure-JAX reference (mirrors the PyTorch forward, eval-mode BN)
# ---------------------------------------------------------------------------
def ref_forward(x, params, eps=1e-5):
    def bn(z, p):
        g, b, m, v = p
        scale = g / jnp.sqrt(v + eps)
        return (z - m[None, :, None]) * scale[None, :, None] + b[None, :, None]

    def conv_circ(z, w):
        zp = jnp.pad(z, ((0, 0), (0, 0), (PAD, PAD)), mode="wrap")
        return jax.lax.conv_general_dilated(
            zp, w, window_strides=(1,), padding="VALID",
            dimension_numbers=("NCH", "OIH", "NCH"))

    h = jax.nn.relu(bn(x, params["bn1"]))
    h = conv_circ(h, params["w1"])
    h = jax.nn.relu(bn(h, params["bn2"]))
    h = conv_circ(h, params["w2"])
    return h + x


if __name__ == "__main__":
    N, C, L = 16, 4, 128   # batch, channels (in == out), sequence length
    key = jax.random.PRNGKey(0)
    kx, kw1, kw2, kg1, kb1, km1, kv1, kg2, kb2, km2, kv2 = jax.random.split(key, 11)

    x = jax.random.normal(kx, (N, C, L), dtype=jnp.float32)

    params = {
        "w1": 0.1 * jax.random.normal(kw1, (C, C, K), dtype=jnp.float32),
        "w2": 0.1 * jax.random.normal(kw2, (C, C, K), dtype=jnp.float32),
        # (gamma, beta, running_mean, running_var) — eval-mode BatchNorm1d
        "bn1": (
            1.0 + 0.1 * jax.random.normal(kg1, (C,), dtype=jnp.float32),
            0.1 * jax.random.normal(kb1, (C,), dtype=jnp.float32),
            0.1 * jax.random.normal(km1, (C,), dtype=jnp.float32),
            jax.random.uniform(kv1, (C,), minval=0.5, maxval=1.5, dtype=jnp.float32),
        ),
        "bn2": (
            1.0 + 0.1 * jax.random.normal(kg2, (C,), dtype=jnp.float32),
            0.1 * jax.random.normal(kb2, (C,), dtype=jnp.float32),
            0.1 * jax.random.normal(km2, (C,), dtype=jnp.float32),
            jax.random.uniform(kv2, (C,), minval=0.5, maxval=1.5, dtype=jnp.float32),
        ),
    }

    # jit-wrapping works now that the runtime roll-direction probe is gone.
    fwd = jax.jit(lambda xx: resblock_forward(xx, params))
    out = jax.block_until_ready(fwd(x))
    ref = jax.block_until_ready(ref_forward(x, params))
    assert out.shape == x.shape and out.dtype == x.dtype
    np.testing.assert_allclose(np.asarray(out), np.asarray(ref), rtol=2e-5, atol=2e-5)
    # TODO(synk): training-mode BatchNorm (batch statistics) not implemented; eval-mode semantics used.
    print("KERNEL_OK")
</pallas_src>

<mosaic_0001>
module attributes {stable_mosaic.version = 11 : i64} {
  func.func @resblock_kernel(%arg0: i32, %arg1: memref<32x128xf32, #tpu.memory_space<vmem>>, %arg2: memref<32x1xf32, #tpu.memory_space<vmem>>, %arg3: memref<32x1xf32, #tpu.memory_space<vmem>>, %arg4: memref<5x32x32xf32, #tpu.memory_space<vmem>>, %arg5: memref<32x1xf32, #tpu.memory_space<vmem>>, %arg6: memref<32x1xf32, #tpu.memory_space<vmem>>, %arg7: memref<5x32x32xf32, #tpu.memory_space<vmem>>, %arg8: memref<32x128xf32, #tpu.memory_space<vmem>>) attributes {dimension_semantics = [#tpu.dimension_semantics<parallel>], iteration_bounds = array<i64: 2>, scalar_prefetch = 0 : i64, scratch_operands = 0 : i64, tpu.core_type = #tpu.core_type<tc>, window_params = [{transform_indices = @transform_0, window_bounds = array<i64: 32, 128>}, {pipeline_mode = #tpu.pipeline_mode<synchronous>, transform_indices = @transform_1, window_bounds = array<i64: 32, 1>}, {pipeline_mode = #tpu.pipeline_mode<synchronous>, transform_indices = @transform_2, window_bounds = array<i64: 32, 1>}, {pipeline_mode = #tpu.pipeline_mode<synchronous>, transform_indices = @transform_3, window_bounds = array<i64: 5, 32, 32>}, {pipeline_mode = #tpu.pipeline_mode<synchronous>, transform_indices = @transform_4, window_bounds = array<i64: 32, 1>}, {pipeline_mode = #tpu.pipeline_mode<synchronous>, transform_indices = @transform_5, window_bounds = array<i64: 32, 1>}, {pipeline_mode = #tpu.pipeline_mode<synchronous>, transform_indices = @transform_6, window_bounds = array<i64: 5, 32, 32>}, {transform_indices = @transform_7, window_bounds = array<i64: 32, 128>}]} {
    %c0 = arith.constant 0 : index
    %c0_0 = arith.constant 0 : index
    %0 = vector.load %arg1[%c0, %c0_0] : memref<32x128xf32, #tpu.memory_space<vmem>>, vector<32x128xf32>
    %c0_1 = arith.constant 0 : index
    %c0_2 = arith.constant 0 : index
    %1 = vector.load %arg2[%c0_1, %c0_2] : memref<32x1xf32, #tpu.memory_space<vmem>>, vector<32x1xf32>
    %2 = vector.broadcast %1 : vector<32x1xf32> to vector<32x128xf32>
    %3 = arith.mulf %0, %2 : vector<32x128xf32>
    %c0_3 = arith.constant 0 : index
    %c0_4 = arith.constant 0 : index
    %4 = vector.load %arg3[%c0_3, %c0_4] : memref<32x1xf32, #tpu.memory_space<vmem>>, vector<32x1xf32>
    %5 = vector.broadcast %4 : vector<32x1xf32> to vector<32x128xf32>
    %6 = arith.addf %3, %5 : vector<32x128xf32>
    %cst = arith.constant 0.000000e+00 : f32
    %7 = vector.broadcast %cst : f32 to vector<32x128xf32>
    %8 = arith.maximumf %6, %7 : vector<32x128xf32>
    %c2_i32 = arith.constant 2 : i32
    %9 = tpu.dynamic_rotate %8 by %c2_i32 dim 1 : vector<32x128xf32>, i32 -> vector<32x128xf32>
    %c0_5 = arith.constant 0 : index
    %c0_6 = arith.constant 0 : index
    %c0_7 = arith.constant 0 : index
    %10 = vector.load %arg4[%c0_5, %c0_6, %c0_7] : memref<5x32x32xf32, #tpu.memory_space<vmem>>, vector<1x32x32xf32>
    %11 = vector.shape_cast %10 : vector<1x32x32xf32> to vector<32x32xf32>
    %cst_8 = arith.constant dense<0.000000e+00> : vector<32x128xf32>
    %12 = tpu.matmul %11, %9, %cst_8 {dimension_numbers = #tpu.dot_dimension_numbers<[1], [0], [0], [1], [0, 0, 1, 1], [], []>} : vector<32x32xf32>, vector<32x128xf32>, vector<32x128xf32> -> vector<32x128xf32>
    %c1_i32 = arith.constant 1 : i32
    %13 = tpu.dynamic_rotate %8 by %c1_i32 dim 1 : vector<32x128xf32>, i32 -> vector<32x128xf32>
    %c1 = arith.constant 1 : index
    %c0_9 = arith.constant 0 : index
    %c0_10 = arith.constant 0 : index
    %14 = vector.load %arg4[%c1, %c0_9, %c0_10] : memref<5x32x32xf32, #tpu.memory_space<vmem>>, vector<1x32x32xf32>
    %15 = vector.shape_cast %14 : vector<1x32x32xf32> to vector<32x32xf32>
    %cst_11 = arith.constant dense<0.000000e+00> : vector<32x128xf32>
    %16 = tpu.matmul %15, %13, %cst_11 {dimension_numbers = #tpu.dot_dimension_numbers<[1], [0], [0], [1], [0, 0, 1, 1], [], []>} : vector<32x32xf32>, vector<32x128xf32>, vector<32x128xf32> -> vector<32x128xf32>
    %17 = arith.addf %12, %16 : vector<32x128xf32>
    %c2 = arith.constant 2 : index
    %c0_12 = arith.constant 0 : index
    %c0_13 = arith.constant 0 : index
    %18 = vector.load %arg4[%c2, %c0_12, %c0_13] : memref<5x32x32xf32, #tpu.memory_space<vmem>>, vector<1x32x32xf32>
    %19 = vector.shape_cast %18 : vector<1x32x32xf32> to vector<32x32xf32>
    %cst_14 = arith.constant dense<0.000000e+00> : vector<32x128xf32>
    %20 = tpu.matmul %19, %8, %cst_14 {dimension_numbers = #tpu.dot_dimension_numbers<[1], [0], [0], [1], [0, 0, 1, 1], [], []>} : vector<32x32xf32>, vector<32x128xf32>, vector<32x128xf32> -> vector<32x128xf32>
    %21 = arith.addf %17, %20 : vector<32x128xf32>
    %c127_i32 = arith.constant 127 : i32
    %22 = tpu.dynamic_rotate %8 by %c127_i32 dim 1 : vector<32x128xf32>, i32 -> vector<32x128xf32>
    %c3 = arith.constant 3 : index
    %c0_15 = arith.constant 0 : index
    %c0_16 = arith.constant 0 : index
    %23 = vector.load %arg4[%c3, %c0_15, %c0_16] : memref<5x32x32xf32, #tpu.memory_space<vmem>>, vector<1x32x32xf32>
    %24 = vector.shape_cast %23 : vector<1x32x32xf32> to vector<32x32xf32>
    %cst_17 = arith.constant dense<0.000000e+00> : vector<32x128xf32>
    %25 = tpu.matmul %24, %22, %cst_17 {dimension_numbers = #tpu.dot_dimension_numbers<[1], [0], [0], [1], [0, 0, 1, 1], [], []>} : vector<32x32xf32>, vector<32x128xf32>, vector<32x128xf32> -> vector<32x128xf32>
    %26 = arith.addf %21, %25 : vector<32x128xf32>
    %c126_i32 = arith.constant 126 : i32
    %27 = tpu.dynamic_rotate %8 by %c126_i32 dim 1 : vector<32x128xf32>, i32 -> vector<32x128xf32>
    %c4 = arith.constant 4 : index
    %c0_18 = arith.constant 0 : index
    %c0_19 = arith.constant 0 : index
    %28 = vector.load %arg4[%c4, %c0_18, %c0_19] : memref<5x32x32xf32, #tpu.memory_space<vmem>>, vector<1x32x32xf32>
    %29 = vector.shape_cast %28 : vector<1x32x32xf32> to vector<32x32xf32>
    %cst_20 = arith.constant dense<0.000000e+00> : vector<32x128xf32>
    %30 = tpu.matmul %29, %27, %cst_20 {dimension_numbers = #tpu.dot_dimension_numbers<[1], [0], [0], [1], [0, 0, 1, 1], [], []>} : vector<32x32xf32>, vector<32x128xf32>, vector<32x128xf32> -> vector<32x128xf32>
    %31 = arith.addf %26, %30 : vector<32x128xf32>
    %c0_21 = arith.constant 0 : index
    %c0_22 = arith.constant 0 : index
    %32 = vector.load %arg5[%c0_21, %c0_22] : memref<32x1xf32, #tpu.memory_space<vmem>>, vector<32x1xf32>
    %33 = vector.broadcast %32 : vector<32x1xf32> to vector<32x128xf32>
    %34 = arith.mulf %31, %33 : vector<32x128xf32>
    %c0_23 = arith.constant 0 : index
    %c0_24 = arith.constant 0 : index
    %35 = vector.load %arg6[%c0_23, %c0_24] : memref<32x1xf32, #tpu.memory_space<vmem>>, vector<32x1xf32>
    %36 = vector.broadcast %35 : vector<32x1xf32> to vector<32x128xf32>
    %37 = arith.addf %34, %36 : vector<32x128xf32>
    %cst_25 = arith.constant 0.000000e+00 : f32
    %38 = vector.broadcast %cst_25 : f32 to vector<32x128xf32>
    %39 = arith.maximumf %37, %38 : vector<32x128xf32>
    %c2_i32_26 = arith.constant 2 : i32
    %40 = tpu.dynamic_rotate %39 by %c2_i32_26 dim 1 : vector<32x128xf32>, i32 -> vector<32x128xf32>
    %c0_27 = arith.constant 0 : index
    %c0_28 = arith.constant 0 : index
    %c0_29 = arith.constant 0 : index
    %41 = vector.load %arg7[%c0_27, %c0_28, %c0_29] : memref<5x32x32xf32, #tpu.memory_space<vmem>>, vector<1x32x32xf32>
    %42 = vector.shape_cast %41 : vector<1x32x32xf32> to vector<32x32xf32>
    %cst_30 = arith.constant dense<0.000000e+00> : vector<32x128xf32>
    %43 = tpu.matmul %42, %40, %cst_30 {dimension_numbers = #tpu.dot_dimension_numbers<[1], [0], [0], [1], [0, 0, 1, 1], [], []>} : vector<32x32xf32>, vector<32x128xf32>, vector<32x128xf32> -> vector<32x128xf32>
    %c1_i32_31 = arith.constant 1 : i32
    %44 = tpu.dynamic_rotate %39 by %c1_i32_31 dim 1 : vector<32x128xf32>, i32 -> vector<32x128xf32>
    %c1_32 = arith.constant 1 : index
    %c0_33 = arith.constant 0 : index
    %c0_34 = arith.constant 0 : index
    %45 = vector.load %arg7[%c1_32, %c0_33, %c0_34] : memref<5x32x32xf32, #tpu.memory_space<vmem>>, vector<1x32x32xf32>
    %46 = vector.shape_cast %45 : vector<1x32x32xf32> to vector<32x32xf32>
    %cst_35 = arith.constant dense<0.000000e+00> : vector<32x128xf32>
    %47 = tpu.matmul %46, %44, %cst_35 {dimension_numbers = #tpu.dot_dimension_numbers<[1], [0], [0], [1], [0, 0, 1, 1], [], []>} : vector<32x32xf32>, vector<32x128xf32>, vector<32x128xf32> -> vector<32x128xf32>
    %48 = arith.addf %43, %47 : vector<32x128xf32>
    %c2_36 = arith.constant 2 : index
    %c0_37 = arith.constant 0 : index
    %c0_38 = arith.constant 0 : index
    %49 = vector.load %arg7[%c2_36, %c0_37, %c0_38] : memref<5x32x32xf32, #tpu.memory_space<vmem>>, vector<1x32x32xf32>
    %50 = vector.shape_cast %49 : vector<1x32x32xf32> to vector<32x32xf32>
    %cst_39 = arith.constant dense<0.000000e+00> : vector<32x128xf32>
    %51 = tpu.matmul %50, %39, %cst_39 {dimension_numbers = #tpu.dot_dimension_numbers<[1], [0], [0], [1], [0, 0, 1, 1], [], []>} : vector<32x32xf32>, vector<32x128xf32>, vector<32x128xf32> -> vector<32x128xf32>
    %52 = arith.addf %48, %51 : vector<32x128xf32>
    %c127_i32_40 = arith.constant 127 : i32
    %53 = tpu.dynamic_rotate %39 by %c127_i32_40 dim 1 : vector<32x128xf32>, i32 -> vector<32x128xf32>
    %c3_41 = arith.constant 3 : index
    %c0_42 = arith.constant 0 : index
    %c0_43 = arith.constant 0 : index
    %54 = vector.load %arg7[%c3_41, %c0_42, %c0_43] : memref<5x32x32xf32, #tpu.memory_space<vmem>>, vector<1x32x32xf32>
    %55 = vector.shape_cast %54 : vector<1x32x32xf32> to vector<32x32xf32>
    %cst_44 = arith.constant dense<0.000000e+00> : vector<32x128xf32>
    %56 = tpu.matmul %55, %53, %cst_44 {dimension_numbers = #tpu.dot_dimension_numbers<[1], [0], [0], [1], [0, 0, 1, 1], [], []>} : vector<32x32xf32>, vector<32x128xf32>, vector<32x128xf32> -> vector<32x128xf32>
    %57 = arith.addf %52, %56 : vector<32x128xf32>
    %c126_i32_45 = arith.constant 126 : i32
    %58 = tpu.dynamic_rotate %39 by %c126_i32_45 dim 1 : vector<32x128xf32>, i32 -> vector<32x128xf32>
    %c4_46 = arith.constant 4 : index
    %c0_47 = arith.constant 0 : index
    %c0_48 = arith.constant 0 : index
    %59 = vector.load %arg7[%c4_46, %c0_47, %c0_48] : memref<5x32x32xf32, #tpu.memory_space<vmem>>, vector<1x32x32xf32>
    %60 = vector.shape_cast %59 : vector<1x32x32xf32> to vector<32x32xf32>
    %cst_49 = arith.constant dense<0.000000e+00> : vector<32x128xf32>
    %61 = tpu.matmul %60, %58, %cst_49 {dimension_numbers = #tpu.dot_dimension_numbers<[1], [0], [0], [1], [0, 0, 1, 1], [], []>} : vector<32x32xf32>, vector<32x128xf32>, vector<32x128xf32> -> vector<32x128xf32>
    %62 = arith.addf %57, %61 : vector<32x128xf32>
    %63 = arith.addf %62, %0 : vector<32x128xf32>
    %c0_50 = arith.constant 0 : index
    %c0_51 = arith.constant 0 : index
    %64 = vector.load %arg8[%c0_50, %c0_51] : memref<32x128xf32, #tpu.memory_space<vmem>>, vector<32x128xf32>
    tpu.vector_store %arg8[%c0_50, %c0_51], %63 {strides = array<i32>} : memref<32x128xf32, #tpu.memory_space<vmem>>, vector<32x128xf32>,
    return
  }
  func.func @transform_0(%arg0: i32) -> (i32, i32) {
    %c0_i32 = arith.constant 0 : i32
    %c0_i32_0 = arith.constant 0 : i32
    return %arg0, %c0_i32 : i32, i32
  }
  func.func @transform_1(%arg0: i32) -> (i32, i32) {
    %c0_i32 = arith.constant 0 : i32
    %c0_i32_0 = arith.constant 0 : i32
    %c0_i32_1 = arith.constant 0 : i32
    return %c0_i32, %c0_i32_0 : i32, i32
  }
  func.func @transform_2(%arg0: i32) -> (i32, i32) {
    %c0_i32 = arith.constant 0 : i32
    %c0_i32_0 = arith.constant 0 : i32
    %c0_i32_1 = arith.constant 0 : i32
    return %c0_i32, %c0_i32_0 : i32, i32
  }
  func.func @transform_3(%arg0: i32) -> (i32, i32, i32) {
    %c0_i32 = arith.constant 0 : i32
    %c0_i32_0 = arith.constant 0 : i32
    %c0_i32_1 = arith.constant 0 : i32
    %c0_i32_2 = arith.constant 0 : i32
    return %c0_i32, %c0_i32_0, %c0_i32_1 : i32, i32, i32
  }
  func.func @transform_4(%arg0: i32) -> (i32, i32) {
    %c0_i32 = arith.constant 0 : i32
    %c0_i32_0 = arith.constant 0 : i32
    %c0_i32_1 = arith.constant 0 : i32
    return %c0_i32, %c0_i32_0 : i32, i32
  }
  func.func @transform_5(%arg0: i32) -> (i32, i32) {
    %c0_i32 = arith.constant 0 : i32
    %c0_i32_0 = arith.constant 0 : i32
    %c0_i32_1 = arith.constant 0 : i32
    return %c0_i32, %c0_i32_0 : i32, i32
  }
  func.func @transform_6(%arg0: i32) -> (i32, i32, i32) {
    %c0_i32 = arith.constant 0 : i32
    %c0_i32_0 = arith.constant 0 : i32
    %c0_i32_1 = arith.constant 0 : i32
    %c0_i32_2 = arith.constant 0 : i32
    return %c0_i32, %c0_i32_0, %c0_i32_1 : i32, i32, i32
  }
  func.func @transform_7(%arg0: i32) -> (i32, i32) {
    %c0_i32 = arith.constant 0 : i32
    %c0_i32_0 = arith.constant 0 : i32
    return %arg0, %c0_i32 : i32, i32
  }
}

</mosaic_0001>

<llo_original>
// kernel: tile.18
$region0: #{tile.18}
  #allocation0 [shape = 's32[1]{0}', space=sflag, size = 0x4, scoped, tag = 'scoped memory for tile.18']
  %s0 = inlined_call_operand.vmem [shape: f32[4], index: 0, kind: input, shape index: {}]
  %s1 = inlined_call_operand.vmem [shape: f32[8,4], index: 1, kind: output, shape index: {}]
  // Predicated region
  $region2: #{tile.18} parent=0 // pred_check
    _
  $region3: #{tile.18} parent=0 // pred_check_branch
    %3 = sbr.rel (0) target = $region5
  $region4: #{tile.18} parent=0 // pred_region
    _
  $region5: #{tile.18} parent=0 // pred_fallthru
    _
  %v4 = vld [vmem:[%s0] ss:$0 sm:$0xff]
  %5 = vst [vmem:[%s1] sm:$0xff] %v4

// kernel: tile.0
$region0: #{tile.0}
  %s0 = inlined_call_operand.vmem [shape: f32[8,4], index: 0, kind: input, shape index: {}]
  %s1 = inlined_call_operand.vmem [shape: f32[32,1], index: 1, kind: output, shape index: {}]
  %v2 = vld [vmem:[%s0] sm:$0xff]
  %vm3 = vcmask 7168
  %4 = vst.msk [vmem:[%s1] ss:$4 sm:$0xff] %vm3, %v2
  %v5 = vld [vmem:[%s0] sm:$0xff]
  %6 = vrot.lane.b32.xlu0 %v5, 127
  %v7 = vpop.permute.xlu0 %6
  %vm8 = vcmask 7168
  %s9 = scalar_lea.vmem %s1, 1
  %10 = vst.msk [vmem:[%s9] ss:$4 sm:$0xff] %vm8, %v7
  %v11 = vld [vmem:[%s0] sm:$0xff]
  %12 = vrot.lane.b32.xlu0 %v11, 126
  %v13 = vpop.permute.xlu0 %12
  %vm14 = vcmask 7168
  %s15 = scalar_lea.vmem %s1, 2
  %16 = vst.msk [vmem:[%s15] ss:$4 sm:$0xff] %vm14, %v13
  %v17 = vld [vmem:[%s0] sm:$0xff]
  %18 = vrot.lane.b32.xlu0 %v17, 125
  %v19 = vpop.permute.xlu0 %18
  %vm20 = vcmask 7168
  %s21 = scalar_lea.vmem %s1, 3
  %22 = vst.msk [vmem:[%s21] ss:$4 sm:$0xff] %vm20, %v19

// kernel: _lambda_.1
$region0: #{_lambda_.1}
  #allocation0 [shape = 'u32[]', space=smem, size = 0x4, offset = 0x4, fixed_abs, tag = 'smem constant byte address 0x4 - core index']
  #allocation1 [shape = 'u32[144,128]{1,0:T(1,128)}', space=vmem, size = 0x12000, scoped, tag = 'internal scratch']
  %s0 = inlined_call_operand.vmem [shape: f32[64,128], index: 0, kind: input, shape index: {}]
  %s1 = inlined_call_operand.vmem [shape: f32[32,1], index: 1, kind: input, shape index: {}]
  %s2 = inlined_call_operand.vmem [shape: f32[32,1], index: 2, kind: input, shape index: {}]
  %s3 = inlined_call_operand.vmem [shape: f32[5,32,32], index: 3, kind: input, shape index: {}]
  %s4 = inlined_call_operand.vmem [shape: f32[32,1], index: 4, kind: input, shape index: {}]
  %s5 = inlined_call_operand.vmem [shape: f32[32,1], index: 5, kind: input, shape index: {}]
  %s6 = inlined_call_operand.vmem [shape: f32[5,32,32], index: 6, kind: input, shape index: {}]
  %s7 = inlined_call_operand.hbm [shape: f32[64,128], index: 7, kind: output, shape index: {}]
  %s8 = sld [smem:[#allocation0]]
  $region61: #{_lambda_.1} parent=0
    _
  %s10 = ssub.s32 1, %s8
  %s11 = scalar_select 0, %s10, %s8
  $region1: #{_lambda_.1} parent=0
    #allocation2 [shape = 'u8[32768]{0}', space=vmem, size = 0x8000, scoped, tag = 'output window, operand 0']
    #allocation3 [shape = 's32[2]{0}', space=sflag, size = 0x8, scoped, tag = 'scoped memory for _lambda_.1']
    %12 = vsyncpa [#allocation3], 0
    %s13 = scalar_lea.sflag [#allocation3], 1
    %14 = vsyncpa %s13, 0
    loop: start=0, step=1, limit=4
    $region2: #{_lambda_.1} parent=1 // loop_pre_header
      _
    $region3: #{_lambda_.1} parent=1 // loop_header
      %s16 = sphi 0, %s20
      %p17 = scmp.ge.s32.totalorder %s16, 4
      %s26 = sphi 0, %s28
      %s29 = sphi 0, %s26
      %s30 = sphi 0, %s29
      %s46 = sphi 0, %s30
      %s50 = sphi 0, %s50
      %s52 = sphi 0, %s50
      %s53 = sphi 0, %s52
      %s67 = sphi 0, %s53
      %s71 = sphi 0, %s71
      %s73 = sphi 0, %s71
      %s74 = sphi 0, %s73
      %s88 = sphi 0, %s74
      %s92 = sphi 0, %s92
      %s94 = sphi 0, %s92
      %s95 = sphi 0, %s94
      %s109 = sphi 0, %s95
      %s113 = sphi 0, %s113
      %s115 = sphi 0, %s113
      %s116 = sphi 0, %s115
      %s130 = sphi 0, %s116
      %s134 = sphi 0, %s134
      %s136 = sphi 0, %s134
      %s137 = sphi 0, %s136
      %s151 = sphi 0, %s137
      %s155 = sphi 0, %s155
      %s157 = sphi 0, %s155
      %s158 = sphi 0, %s157
      %s172 = sphi 0, %s158
      %s178 = sphi 0, %s180
      %s181 = sphi 0, %s178
      %s182 = sphi 0, %s181
      %s198 = sphi 0, %s182
    $region4: #{_lambda_.1} parent=1 // loop_header_branch
      %19 = sbr.rel (%p17) target = $region8
    $region5: #{_lambda_.1} parent=1 // loop_body
      %s21 = ssub.s32 %s16, 1
      %s22 = ssub.s32 %s16, 2
      %s23 = sadd.s32 %s16, 1
      %s24 = ssub.s32 %s16, %s23
      %p25 = scmp.eq.s32.totalorder %s24, 0
      %s27 = sadd.s32 %s26, 1
      %s28 = scalar_select %p25, %s26, %s27
      %p31 = pneg %p25
      %p32 = scmp.eq.s32.totalorder %s16, 1
      %p33 = por %p31, %p32
      %p34 = scmp.ne.s32.totalorder %s26, %s29
      %p35 = scmp.eq.s32.totalorder %s16, 0
      %p36 = por %p34, %p35
      %p37 = scmp.ne.s32.totalorder %s26, %s29
      %p38 = scmp.eq.s32.totalorder %s21, 1
      %p39 = por %p37, %p38
      %p40 = scmp.ne.s32.totalorder %s29, %s30
      %p41 = scmp.eq.s32.totalorder %s21, 0
      %p42 = por %p40, %p41
      %p43 = scmp.ne.s32.totalorder %s29, %s30
      %p44 = scmp.eq.s32.totalorder %s22, 1
      %p45 = por %p43, %p44
      %p47 = scmp.ne.s32.totalorder %s30, %s46
      %p48 = scmp.eq.s32.totalorder %s22, 0
      %p49 = por %p47, %p48
      %s51 = sadd.s32 %s50, 1
      %p54 = scmp.eq.s32.totalorder %s16, 1
      %p55 = scmp.ne.s32.totalorder %s50, %s52
      %p56 = scmp.eq.s32.totalorder %s16, 0
      %p57 = por %p55, %p56
      %p58 = scmp.ne.s32.totalorder %s50, %s52
      %p59 = scmp.eq.s32.totalorder %s21, 1
      %p60 = por %p58, %p59
      %p61 = scmp.ne.s32.totalorder %s52, %s53
      %p62 = scmp.eq.s32.totalorder %s21, 0
      %p63 = por %p61, %p62
      %p64 = scmp.ne.s32.totalorder %s52, %s53
      %p65 = scmp.eq.s32.totalorder %s22, 1
      %p66 = por %p64, %p65
      %p68 = scmp.ne.s32.totalorder %s53, %s67
      %p69 = scmp.eq.s32.totalorder %s22, 0
      %p70 = por %p68, %p69
      %s72 = sadd.s32 %s71, 1
      %p75 = scmp.eq.s32.totalorder %s16, 1
      %p76 = scmp.ne.s32.totalorder %s71, %s73
      %p77 = scmp.eq.s32.totalorder %s16, 0
      %p78 = por %p76, %p77
      %p79 = scmp.ne.s32.totalorder %s71, %s73
      %p80 = scmp.eq.s32.totalorder %s21, 1
      %p81 = por %p79, %p80
      %p82 = scmp.ne.s32.totalorder %s73, %s74
      %p83 = scmp.eq.s32.totalorder %s21, 0
      %p84 = por %p82, %p83
      %p85 = scmp.ne.s32.totalorder %s73, %s74
      %p86 = scmp.eq.s32.totalorder %s22, 1
      %p87 = por %p85, %p86
      %p89 = scmp.ne.s32.totalorder %s74, %s88
      %p90 = scmp.eq.s32.totalorder %s22, 0
      %p91 = por %p89, %p90
      %s93 = sadd.s32 %s92, 1
      %p96 = scmp.eq.s32.totalorder %s16, 1
      %p97 = scmp.ne.s32.totalorder %s92, %s94
      %p98 = scmp.eq.s32.totalorder %s16, 0
      %p99 = por %p97, %p98
      %p100 = scmp.ne.s32.totalorder %s92, %s94
      %p101 = scmp.eq.s32.totalorder %s21, 1
      %p102 = por %p100, %p101
      %p103 = scmp.ne.s32.totalorder %s94, %s95
      %p104 = scmp.eq.s32.totalorder %s21, 0
      %p105 = por %p103, %p104
      %p106 = scmp.ne.s32.totalorder %s94, %s95
      %p107 = scmp.eq.s32.totalorder %s22, 1
      %p108 = por %p106, %p107
      %p110 = scmp.ne.s32.totalorder %s95, %s109
      %p111 = scmp.eq.s32.totalorder %s22, 0
      %p112 = por %p110, %p111
      %s114 = sadd.s32 %s113, 1
      %p117 = scmp.eq.s32.totalorder %s16, 1
      %p118 = scmp.ne.s32.totalorder %s113, %s115
      %p119 = scmp.eq.s32.totalorder %s16, 0
      %p120 = por %p118, %p119
      %p121 = scmp.ne.s32.totalorder %s113, %s115
      %p122 = scmp.eq.s32.totalorder %s21, 1
      %p123 = por %p121, %p122
      %p124 = scmp.ne.s32.totalorder %s115, %s116
      %p125 = scmp.eq.s32.totalorder %s21, 0
      %p126 = por %p124, %p125
      %p127 = scmp.ne.s32.totalorder %s115, %s116
      %p128 = scmp.eq.s32.totalorder %s22, 1
      %p129 = por %p127, %p128
      %p131 = scmp.ne.s32.totalorder %s116, %s130
      %p132 = scmp.eq.s32.totalorder %s22, 0
      %p133 = por %p131, %p132
      %s135 = sadd.s32 %s134, 1
      %p138 = scmp.eq.s32.totalorder %s16, 1
      %p139 = scmp.ne.s32.totalorder %s134, %s136
      %p140 = scmp.eq.s32.totalorder %s16, 0
      %p141 = por %p139, %p140
      %p142 = scmp.ne.s32.totalorder %s134, %s136
      %p143 = scmp.eq.s32.totalorder %s21, 1
      %p144 = por %p142, %p143
      %p145 = scmp.ne.s32.totalorder %s136, %s137
      %p146 = scmp.eq.s32.totalorder %s21, 0
      %p147 = por %p145, %p146
      %p148 = scmp.ne.s32.totalorder %s136, %s137
      %p149 = scmp.eq.s32.totalorder %s22, 1
      %p150 = por %p148, %p149
      %p152 = scmp.ne.s32.totalorder %s137, %s151
      %p153 = scmp.eq.s32.totalorder %s22, 0
      %p154 = por %p152, %p153
      %s156 = sadd.s32 %s155, 1
      %p159 = scmp.eq.s32.totalorder %s16, 1
      %p160 = scmp.ne.s32.totalorder %s155, %s157
      %p161 = scmp.eq.s32.totalorder %s16, 0
      %p162 = por %p160, %p161
      %p163 = scmp.ne.s32.totalorder %s155, %s157
      %p164 = scmp.eq.s32.totalorder %s21, 1
      %p165 = por %p163, %p164
      %p166 = scmp.ne.s32.totalorder %s157, %s158
      %p167 = scmp.eq.s32.totalorder %s21, 0
      %p168 = por %p166, %p167
      %p169 = scmp.ne.s32.totalorder %s157, %s158
      %p170 = scmp.eq.s32.totalorder %s22, 1
      %p171 = por %p169, %p170
      %p173 = scmp.ne.s32.totalorder %s158, %s172
      %p174 = scmp.eq.s32.totalorder %s22, 0
      %p175 = por %p173, %p174
      %s176 = ssub.s32 %s16, %s23
      %p177 = scmp.eq.s32.totalorder %s176, 0
      %s179 = sadd.s32 %s178, 1
      %s180 = scalar_select %p177, %s178, %s179
      %p183 = pneg %p177
      %p184 = scmp.eq.s32.totalorder %s16, 1
      %p185 = por %p183, %p184
      %p186 = scmp.ne.s32.totalorder %s178, %s181
      %p187 = scmp.eq.s32.totalorder %s16, 0
      %p188 = por %p186, %p187
      %p189 = scmp.ne.s32.totalorder %s178, %s181
      %p190 = scmp.eq.s32.totalorder %s21, 1
      %p191 = por %p189, %p190
      %p192 = scmp.ne.s32.totalorder %s181, %s182
      %p193 = scmp.eq.s32.totalorder %s21, 0
      %p194 = por %p192, %p193
      %p195 = scmp.ne.s32.totalorder %s181, %s182
      %p196 = scmp.eq.s32.totalorder %s22, 1
      %p197 = por %p195, %p196
      %p199 = scmp.ne.s32.totalorder %s182, %s198
      %p200 = scmp.eq.s32.totalorder %s22, 0
      %p201 = por %p199, %p200
      %p202 = scmp.le.s32.totalorder 1, %s16
      %p203 = scmp.lt.s32.totalorder %s16, 3
      %p204 = pnand %p202, %p203
      %p205 = pneg %p204
      // Predicated region
      $region9: #{_lambda_.1} parent=5 // pred_check
        _
      $region10: #{_lambda_.1} parent=5 // pred_check_branch
        %207 = sbr.rel (%p204) target = $region12
      $region11: #{_lambda_.1} parent=5 // pred_region
        %s208 = ssub.s32 %s16, 1
        // Predicated region
        $region13: #{_lambda_.1} parent=11 // pred_check
          %p209 = pneg %p63
        $region14: #{_lambda_.1} parent=11 // pred_check_branch
          %211 = sbr.rel (%p209) target = $region16
        $region15: #{_lambda_.1} parent=11 // pred_region
          _
        $region16: #{_lambda_.1} parent=11 // pred_fallthru
          _
        // Predicated region
        $region17: #{_lambda_.1} parent=11 // pred_check
          %p212 = pneg %p84
        $region18: #{_lambda_.1} parent=11 // pred_check_branch
          %214 = sbr.rel (%p212) target = $region20
        $region19: #{_lambda_.1} parent=11 // pred_region
          _
        $region20: #{_lambda_.1} parent=11 // pred_fallthru
          _
        // Predicated region
        $region21: #{_lambda_.1} parent=11 // pred_check
          %p215 = pneg %p105
        $region22: #{_lambda_.1} parent=11 // pred_check_branch
          %217 = sbr.rel (%p215) target = $region24
        $region23: #{_lambda_.1} parent=11 // pred_region
          _
        $region24: #{_lambda_.1} parent=11 // pred_fallthru
          _
        // Predicated region
        $region25: #{_lambda_.1} parent=11 // pred_check
          %p218 = pneg %p126
        $region26: #{_lambda_.1} parent=11 // pred_check_branch
          %220 = sbr.rel (%p218) target = $region28
        $region27: #{_lambda_.1} parent=11 // pred_region
          _
        $region28: #{_lambda_.1} parent=11 // pred_fallthru
          _
        // Predicated region
        $region29: #{_lambda_.1} parent=11 // pred_check
          %p221 = pneg %p147
        $region30: #{_lambda_.1} parent=11 // pred_check_branch
          %223 = sbr.rel (%p221) target = $region32
        $region31: #{_lambda_.1} parent=11 // pred_region
          _
        $region32: #{_lambda_.1} parent=11 // pred_fallthru
          _
        // Predicated region
        $region33: #{_lambda_.1} parent=11 // pred_check
          %p224 = pneg %p168
        $region34: #{_lambda_.1} parent=11 // pred_check_branch
          %226 = sbr.rel (%p224) target = $region36
        $region35: #{_lambda_.1} parent=11 // pred_region
          _
        $region36: #{_lambda_.1} parent=11 // pred_fallthru
          _
      $region12: #{_lambda_.1} parent=5 // pred_fallthru
        _
      %p227 = scmp.lt.s32.totalorder %s16, 2
      // Predicated region
      $region37: #{_lambda_.1} parent=5 // pred_check
        %p228 = pneg %p227
      $region38: #{_lambda_.1} parent=5 // pred_check_branch
        %230 = sbr.rel (%p228) target = $region40
      $region39: #{_lambda_.1} parent=5 // pred_region
        // Predicated region
        $region41: #{_lambda_.1} parent=39 // pred_check
          %p231 = pneg %p36
        $region42: #{_lambda_.1} parent=39 // pred_check_branch
          %233 = sbr.rel (%p231) target = $region44
        $region43: #{_lambda_.1} parent=39 // pred_region
          %s234 = smul.u32 4, %s16
          %p235 = scmp.lt.s32.totalorder %s234, 7
          %s236 = scalar_select %p235, %s234, 7
          %s237 = smul.addr %s236, 8
          %s238 = scalar_lea.vmem %s0, %s237
          %s239 = smul.u32 4, %s16
        $region44: #{_lambda_.1} parent=39 // pred_fallthru
          _
      $region40: #{_lambda_.1} parent=5 // pred_fallthru
        _
      %p240 = scmp.le.s32.totalorder 1, %s16
      %p241 = scmp.lt.s32.totalorder %s16, 3
      %p242 = pnand %p240, %p241
      %p243 = pneg %p242
      // Predicated region
      $region45: #{_lambda_.1} parent=5 // pred_check
        _
      $region46: #{_lambda_.1} parent=5 // pred_check_branch
        %245 = sbr.rel (%p242) target = $region48
      $region47: #{_lambda_.1} parent=5 // pred_region
        %s246 = ssub.s32 %s16, 1
        %s247 = smul.u32 4, %s21
        %p248 = scmp.lt.s32.totalorder %s247, 7
        %s249 = scalar_select %p248, %s247, 7
        %s250 = smul.addr %s249, 8
        %s251 = scalar_lea.vmem %s0, %s250
        %p252 = pneg %p42
        %p253 = pneg %p39
        %p254 = pneg %p63
        %p255 = pneg %p60
        %p256 = pneg %p84
        %p257 = pneg %p81
        %p258 = pneg %p105
        %p259 = pneg %p102
        %p260 = pneg %p126
        %p261 = pneg %p123
        %p262 = pneg %p147
        %p263 = pneg %p144
        %p264 = pneg %p168
        %p265 = pneg %p165
        %p266 = pneg %p194
        %p267 = pneg %p191
        %s268 = sand.u32 %s181, 1
        %s269 = scalar_lea.sflag [#allocation3], %s268
        %s270 = sand.u32 %s181, 1
        %s271 = smul.addr %s270, 32
        %s272 = scalar_lea.vmem [#allocation2], %s271
        %s273 = smul.u32 4, %s21
        %p274 = scmp.lt.s32.totalorder %s273, 7
        %s275 = scalar_select %p274, %s273, 7
        %s276 = smul.addr %s275, 8
        %s277 = scalar_lea.vmem %s0, %s276
        %s278 = smul.u32 4, %s21
        %s279 = smul.u32 4, %s21
        %v280 = vld [vmem:[%s277] sm:$0xff]
        %v281 = vld [vmem:[%s277 + $0x8] sm:$0xff]
        %v282 = vld [vmem:[%s277 + $0x10] sm:$0xff]
        %v283 = vld [vmem:[%s277 + $0x18] sm:$0xff]
        %v284 = vld [vmem:[%s1] sm:$0xff]
        %v285 = vld [vmem:[%s1 + $0x8] sm:$0xff]
        %v286 = vld [vmem:[%s1 + $0x10] sm:$0xff]
        %v287 = vld [vmem:[%s1 + $0x18] sm:$0xff]
        %289 = vset.pattern.permute.xlu0 0
        %290 = vperm.xlu0 %289, %v284
        %v291 = vpop.permute.xlu0 %290
        %294 = vset.pattern.permute.xlu0 0
        %295 = vperm.xlu0 %294, %v285
        %v296 = vpop.permute.xlu0 %295
        %299 = vset.pattern.permute.xlu0 0
        %300 = vperm.xlu0 %299, %v286
        %v301 = vpop.permute.xlu0 %300
        %304 = vset.pattern.permute.xlu0 0
        %305 = vperm.xlu0 %304, %v287
        %v306 = vpop.permute.xlu0 %305
        %v308 = vmul.f32 %v280, %v291
        %v309 = vmul.f32 %v281, %v296
        %v310 = vmul.f32 %v282, %v301
        %v311 = vmul.f32 %v283, %v306
        %v312 = vld [vmem:[%s2] sm:$0xff]
        %v313 = vld [vmem:[%s2 + $0x8] sm:$0xff]
        %v314 = vld [vmem:[%s2 + $0x10] sm:$0xff]
        %v315 = vld [vmem:[%s2 + $0x18] sm:$0xff]
        %317 = vset.pattern.permute.xlu0 0
        %318 = vperm.xlu0 %317, %v312
        %v319 = vpop.permute.xlu0 %318
        %322 = vset.pattern.permute.xlu0 0
        %323 = vperm.xlu0 %322, %v313
        %v324 = vpop.permute.xlu0 %323
        %327 = vset.pattern.permute.xlu0 0
        %328 = vperm.xlu0 %327, %v314
        %v329 = vpop.permute.xlu0 %328
        %332 = vset.pattern.permute.xlu0 0
        %333 = vperm.xlu0 %332, %v315
        %v334 = vpop.permute.xlu0 %333
        %v336 = vadd.f32 %v308, %v319
        %v337 = vadd.f32 %v309, %v324
        %v338 = vadd.f32 %v310, %v329
        %v339 = vadd.f32 %v311, %v334
        %v340 = vmax.f32 %v336, 0.0
        %v341 = vmax.f32 %v337, 0.0
        %v342 = vmax.f32 %v338, 0.0
        %v343 = vmax.f32 %v339, 0.0
        %344 = vrot.lane.b32.xlu0 %v340, 2
        %v345 = vpop.permute.xlu0 %344
        %346 = vrot.lane.b32.xlu0 %v341, 2
        %v347 = vpop.permute.xlu0 %346
        %348 = vrot.lane.b32.xlu0 %v342, 2
        %v349 = vpop.permute.xlu0 %348
        %350 = vrot.lane.b32.xlu0 %v343, 2
        %v351 = vpop.permute.xlu0 %350
        %v352 = vld [vmem:[%s3] sm:$0xff]
        %v353 = vld [vmem:[%s3 + $0x8] sm:$0xff]
        %v354 = vld [vmem:[%s3 + $0x10] sm:$0xff]
        %v355 = vld [vmem:[%s3 + $0x18] sm:$0xff]
        %356 = vrot.lane.b32.xlu0 %v340, 1
        %v357 = vpop.permute.xlu0 %356
        %358 = vrot.lane.b32.xlu0 %v341, 1
        %v359 = vpop.permute.xlu0 %358
        %360 = vrot.lane.b32.xlu0 %v342, 1
        %v361 = vpop.permute.xlu0 %360
        %362 = vrot.lane.b32.xlu0 %v343, 1
        %v363 = vpop.permute.xlu0 %362
        %s364 = scalar_lea.vmem %s3, 32
        %v365 = vld [vmem:[%s364] sm:$0xff]
        %v366 = vld [vmem:[%s364 + $0x8] sm:$0xff]
        %v367 = vld [vmem:[%s364 + $0x10] sm:$0xff]
        %v368 = vld [vmem:[%s364 + $0x18] sm:$0xff]
        %vm369 = vcmask 261120
        %v371 = vsel %vm369, %v365, 0
        %v374 = vsel %vm369, %v366, 0
        %v377 = vsel %vm369, %v367, 0
        %v380 = vsel %vm369, %v368, 0
        %382 = vmatprep.subr.mxu0 0.0
        %383 = vmatpush1.msra.mxu0 0.0
        %384 = vmatprep.subr.mxu0 0.0
        %385 = vmatpush1.msra.mxu0 0.0
        %386 = vmatprep.subr.mxu0 0.0
        %387 = vmatpush1.msra.mxu0 0.0
        %388 = vmatprep.subr.mxu0 0.0
        %389 = vmatpush1.msra.mxu0 0.0
        %390 = vmatprep.subr.mxu0 0.0
        %391 = vmatpush1.msra.mxu0 0.0
        %392 = vmatprep.subr.mxu0 0.0
        %393 = vmatpush1.msra.mxu0 0.0
        %394 = vmatprep.subr.mxu0 0.0
        %395 = vmatpush1.msra.mxu0 0.0
        %396 = vmatprep.subr.mxu0 0.0
        %397 = vmatpush1.msra.mxu0 0.0
        %398 = vmatprep.subr.mxu0 0.0
        %399 = vmatpush1.msra.mxu0 0.0
        %400 = vmatprep.subr.mxu0 0.0
        %401 = vmatpush1.msra.mxu0 0.0
        %402 = vmatprep.subr.mxu0 0.0
        %403 = vmatpush1.msra.mxu0 0.0
        %404 = vmatprep.subr.mxu0 0.0
        %405 = vmatpush1.msra.mxu0 0.0
        %406 = vmatprep.subr.mxu0 0.0
        %407 = vmatpush1.msra.mxu0 %v363
        %408 = vmatprep.subr.mxu0 0.0
        %409 = vmatpush1.msra.mxu0 %v361
        %410 = vmatprep.subr.mxu0 0.0
        %411 = vmatpush1.msra.mxu0 %v359
        %412 = vmatprep.subr.mxu0 0.0
        %413 = vmatpush1.msra.mxu0 %v357
        %414 = vmatprep.subr.mxu0 0.0
        %415 = vmatpush2.msra.mxu0 0.0
        %416 = vmatprep.subr.mxu0 0.0
        %417 = vmatpush2.msra.mxu0 0.0
        %418 = vmatprep.subr.mxu0 0.0
        %419 = vmatpush2.msra.mxu0 0.0
        %420 = vmatprep.subr.mxu0 0.0
        %421 = vmatpush2.msra.mxu0 0.0
        %422 = vmatprep.subr.mxu0 0.0
        %423 = vmatpush2.msra.mxu0 0.0
        %424 = vmatprep.subr.mxu0 0.0
        %425 = vmatpush2.msra.mxu0 0.0
        %426 = vmatprep.subr.mxu0 0.0
        %427 = vmatpush2.msra.mxu0 0.0
        %428 = vmatprep.subr.mxu0 0.0
        %429 = vmatpush2.msra.mxu0 0.0
        %430 = vmatprep.subr.mxu0 0.0
        %431 = vmatpush2.msra.mxu0 0.0
        %432 = vmatprep.subr.mxu0 0.0
        %433 = vmatpush2.msra.mxu0 0.0
        %434 = vmatprep.subr.mxu0 0.0
        %435 = vmatpush2.msra.mxu0 0.0
        %436 = vmatprep.subr.mxu0 0.0
        %437 = vmatpush2.msra.mxu0 0.0
        %438 = vmatprep.subr.mxu0 0.0
        %439 = vmatpush2.msra.mxu0 0.0
        %440 = vmatprep.subr.mxu0 0.0
        %441 = vmatpush2.msra.mxu0 0.0
        %442 = vmatprep.subr.mxu0 0.0
        %443 = vmatpush2.msra.mxu0 0.0
        %444 = vmatprep.subr.mxu0 0.0
        %445 = vmatpush2.msra.mxu0 0.0
        %446 = vmatprep.mubr.f32.mxu0 0.0
        %447 = vmatmul.mubr.f32.gmra.mxu0 %v371
        %v448 = vpop.f32.mrf.mxu0
        %v449 = vadd.f32 0.0, %v448
        %v450 = vpop.f32.mrf.mxu0
        %451 = vmatprep.mubr.f32.mxu0 0.0
        %452 = vmatmul.mubr.f32.gmra.mxu0 %v374
        %v453 = vpop.f32.mrf.mxu0
        %v454 = vadd.f32 0.0, %v453
        %v455 = vpop.f32.mrf.mxu0
        %456 = vmatprep.mubr.f32.mxu0 0.0
        %457 = vmatmul.mubr.f32.gmra.mxu0 %v377
        %v458 = vpop.f32.mrf.mxu0
        %v459 = vadd.f32 0.0, %v458
        %v460 = vpop.f32.mrf.mxu0
        %461 = vmatprep.mubr.f32.mxu0 0.0
        %462 = vmatmul.mubr.f32.gmra.mxu0 %v380
        %v463 = vpop.f32.mrf.mxu0
        %v464 = vadd.f32 0.0, %v463
        %v465 = vpop.f32.mrf.mxu0
        %466 = vdwg.mxu0
        %v468 = vsel %vm369, %v352, 0
        %v471 = vsel %vm369, %v353, 0
        %v474 = vsel %vm369, %v354, 0
        %v477 = vsel %vm369, %v355, 0
        %479 = vmatprep.subr.mxu0 0.0
        %480 = vmatpush1.msra.mxu0 0.0
        %481 = vmatprep.subr.mxu0 0.0
        %482 = vmatpush1.msra.mxu0 0.0
        %483 = vmatprep.subr.mxu0 0.0
        %484 = vmatpush1.msra.mxu0 0.0
        %485 = vmatprep.subr.mxu0 0.0
        %486 = vmatpush1.msra.mxu0 0.0
        %487 = vmatprep.subr.mxu0 0.0
        %488 = vmatpush1.msra.mxu0 0.0
        %489 = vmatprep.subr.mxu0 0.0
        %490 = vmatpush1.msra.mxu0 0.0
        %491 = vmatprep.subr.mxu0 0.0
        %492 = vmatpush1.msra.mxu0 0.0
        %493 = vmatprep.subr.mxu0 0.0
        %494 = vmatpush1.msra.mxu0 0.0
        %495 = vmatprep.subr.mxu0 0.0
        %496 = vmatpush1.msra.mxu0 0.0
        %497 = vmatprep.subr.mxu0 0.0
        %498 = vmatpush1.msra.mxu0 0.0
        %499 = vmatprep.subr.mxu0 0.0
        %500 = vmatpush1.msra.mxu0 0.0
        %501 = vmatprep.subr.mxu0 0.0
        %502 = vmatpush1.msra.mxu0 0.0
        %503 = vmatprep.subr.mxu0 0.0
        %504 = vmatpush1.msra.mxu0 %v351
        %505 = vmatprep.subr.mxu0 0.0
        %506 = vmatpush1.msra.mxu0 %v349
        %507 = vmatprep.subr.mxu0 0.0
        %508 = vmatpush1.msra.mxu0 %v347
        %509 = vmatprep.subr.mxu0 0.0
        %510 = vmatpush1.msra.mxu0 %v345
        %511 = vmatprep.subr.mxu0 0.0
        %512 = vmatpush2.msra.mxu0 0.0
        %513 = vmatprep.subr.mxu0 0.0
        %514 = vmatpush2.msra.mxu0 0.0
        %515 = vmatprep.subr.mxu0 0.0
        %516 = vmatpush2.msra.mxu0 0.0
        %517 = vmatprep.subr.mxu0 0.0
        %518 = vmatpush2.msra.mxu0 0.0
        %519 = vmatprep.subr.mxu0 0.0
        %520 = vmatpush2.msra.mxu0 0.0
        %521 = vmatprep.subr.mxu0 0.0
        %522 = vmatpush2.msra.mxu0 0.0
        %523 = vmatprep.subr.mxu0 0.0
        %524 = vmatpush2.msra.mxu0 0.0
        %525 = vmatprep.subr.mxu0 0.0
        %526 = vmatpush2.msra.mxu0 0.0
        %527 = vmatprep.subr.mxu0 0.0
        %528 = vmatpush2.msra.mxu0 0.0
        %529 = vmatprep.subr.mxu0 0.0
        %530 = vmatpush2.msra.mxu0 0.0
        %531 = vmatprep.subr.mxu0 0.0
        %532 = vmatpush2.msra.mxu0 0.0
        %533 = vmatprep.subr.mxu0 0.0
        %534 = vmatpush2.msra.mxu0 0.0
        %535 = vmatprep.subr.mxu0 0.0
        %536 = vmatpush2.msra.mxu0 0.0
        %537 = vmatprep.subr.mxu0 0.0
        %538 = vmatpush2.msra.mxu0 0.0
        %539 = vmatprep.subr.mxu0 0.0
        %540 = vmatpush2.msra.mxu0 0.0
        %541 = vmatprep.subr.mxu0 0.0
        %542 = vmatpush2.msra.mxu0 0.0
        %543 = vmatprep.mubr.f32.mxu0 0.0
        %544 = vmatmul.mubr.f32.gmra.mxu0 %v468
        %v545 = vpop.f32.mrf.mxu0
        %v546 = vadd.f32 %v449, %v545
        %v547 = vpop.f32.mrf.mxu0
        %548 = vmatprep.mubr.f32.mxu0 0.0
        %549 = vmatmul.mubr.f32.gmra.mxu0 %v471
        %v550 = vpop.f32.mrf.mxu0
        %v551 = vadd.f32 %v454, %v550
        %v552 = vpop.f32.mrf.mxu0
        %553 = vmatprep.mubr.f32.mxu0 0.0
        %554 = vmatmul.mubr.f32.gmra.mxu0 %v474
        %v555 = vpop.f32.mrf.mxu0
        %v556 = vadd.f32 %v459, %v555
        %v557 = vpop.f32.mrf.mxu0
        %558 = vmatprep.mubr.f32.mxu0 0.0
        %559 = vmatmul.mubr.f32.gmra.mxu0 %v477
        %v560 = vpop.f32.mrf.mxu0
        %v561 = vadd.f32 %v464, %v560
        %v562 = vpop.f32.mrf.mxu0
        %563 = vdwg.mxu0
        %s564 = scalar_lea.vmem %s3, 64
        %v565 = vld [vmem:[%s564] sm:$0xff]
        %v566 = vld [vmem:[%s564 + $0x8] sm:$0xff]
        %v567 = vld [vmem:[%s564 + $0x10] sm:$0xff]
        %v568 = vld [vmem:[%s564 + $0x18] sm:$0xff]
        %v570 = vsel %vm369, %v565, 0
        %v573 = vsel %vm369, %v566, 0
        %v576 = vsel %vm369, %v567, 0
        %v579 = vsel %vm369, %v568, 0
        %581 = vmatprep.subr.mxu0 0.0
        %582 = vmatpush1.msra.mxu0 0.0
        %583 = vmatprep.subr.mxu0 0.0
        %584 = vmatpush1.msra.mxu0 0.0
        %585 = vmatprep.subr.mxu0 0.0
        %586 = vmatpush1.msra.mxu0 0.0
        %587 = vmatprep.subr.mxu0 0.0
        %588 = vmatpush1.msra.mxu0 0.0
        %589 = vmatprep.subr.mxu0 0.0
        %590 = vmatpush1.msra.mxu0 0.0
        %591 = vmatprep.subr.mxu0 0.0
        %592 = vmatpush1.msra.mxu0 0.0
        %593 = vmatprep.subr.mxu0 0.0
        %594 = vmatpush1.msra.mxu0 0.0
        %595 = vmatprep.subr.mxu0 0.0
        %596 = vmatpush1.msra.mxu0 0.0
        %597 = vmatprep.subr.mxu0 0.0
        %598 = vmatpush1.msra.mxu0 0.0
        %599 = vmatprep.subr.mxu0 0.0
        %600 = vmatpush1.msra.mxu0 0.0
        %601 = vmatprep.subr.mxu0 0.0
        %602 = vmatpush1.msra.mxu0 0.0
        %603 = vmatprep.subr.mxu0 0.0
        %604 = vmatpush1.msra.mxu0 0.0
        %605 = vmatprep.subr.mxu0 0.0
        %606 = vmatpush1.msra.mxu0 %v343
        %607 = vmatprep.subr.mxu0 0.0
        %608 = vmatpush1.msra.mxu0 %v342
        %609 = vmatprep.subr.mxu0 0.0
        %610 = vmatpush1.msra.mxu0 %v341
        %611 = vmatprep.subr.mxu0 0.0
        %612 = vmatpush1.msra.mxu0 %v340
        %613 = vmatprep.subr.mxu0 0.0
        %614 = vmatpush2.msra.mxu0 0.0
        %615 = vmatprep.subr.mxu0 0.0
        %616 = vmatpush2.msra.mxu0 0.0
        %617 = vmatprep.subr.mxu0 0.0
        %618 = vmatpush2.msra.mxu0 0.0
        %619 = vmatprep.subr.mxu0 0.0
        %620 = vmatpush2.msra.mxu0 0.0
        %621 = vmatprep.subr.mxu0 0.0
        %622 = vmatpush2.msra.mxu0 0.0
        %623 = vmatprep.subr.mxu0 0.0
        %624 = vmatpush2.msra.mxu0 0.0
        %625 = vmatprep.subr.mxu0 0.0
        %626 = vmatpush2.msra.mxu0 0.0
        %627 = vmatprep.subr.mxu0 0.0
        %628 = vmatpush2.msra.mxu0 0.0
        %629 = vmatprep.subr.mxu0 0.0
        %630 = vmatpush2.msra.mxu0 0.0
        %631 = vmatprep.subr.mxu0 0.0
        %632 = vmatpush2.msra.mxu0 0.0
        %633 = vmatprep.subr.mxu0 0.0
        %634 = vmatpush2.msra.mxu0 0.0
        %635 = vmatprep.subr.mxu0 0.0
        %636 = vmatpush2.msra.mxu0 0.0
        %637 = vmatprep.subr.mxu0 0.0
        %638 = vmatpush2.msra.mxu0 0.0
        %639 = vmatprep.subr.mxu0 0.0
        %640 = vmatpush2.msra.mxu0 0.0
        %641 = vmatprep.subr.mxu0 0.0
        %642 = vmatpush2.msra.mxu0 0.0
        %643 = vmatprep.subr.mxu0 0.0
        %644 = vmatpush2.msra.mxu0 0.0
        %645 = vmatprep.mubr.f32.mxu0 0.0
        %646 = vmatmul.mubr.f32.gmra.mxu0 %v570
        %v647 = vpop.f32.mrf.mxu0
        %v648 = vadd.f32 0.0, %v647
        %v649 = vpop.f32.mrf.mxu0
        %650 = vmatprep.mubr.f32.mxu0 0.0
        %651 = vmatmul.mubr.f32.gmra.mxu0 %v573
        %v652 = vpop.f32.mrf.mxu0
        %v653 = vadd.f32 0.0, %v652
        %v654 = vpop.f32.mrf.mxu0
        %655 = vmatprep.mubr.f32.mxu0 0.0
        %656 = vmatmul.mubr.f32.gmra.mxu0 %v576
        %v657 = vpop.f32.mrf.mxu0
        %v658 = vadd.f32 0.0, %v657
        %v659 = vpop.f32.mrf.mxu0
        %660 = vmatprep.mubr.f32.mxu0 0.0
        %661 = vmatmul.mubr.f32.gmra.mxu0 %v579
        %v662 = vpop.f32.mrf.mxu0
        %v663 = vadd.f32 0.0, %v662
        %v664 = vpop.f32.mrf.mxu0
        %665 = vdwg.mxu0
        %v666 = vadd.f32 %v546, %v648
        %v667 = vadd.f32 %v551, %v653
        %v668 = vadd.f32 %v556, %v658
        %v669 = vadd.f32 %v561, %v663
        %670 = vrot.lane.b32.xlu0 %v340, 127
        %v671 = vpop.permute.xlu0 %670
        %672 = vrot.lane.b32.xlu0 %v341, 127
        %v673 = vpop.permute.xlu0 %672
        %674 = vrot.lane.b32.xlu0 %v342, 127
        %v675 = vpop.permute.xlu0 %674
        %676 = vrot.lane.b32.xlu0 %v343, 127
        %v677 = vpop.permute.xlu0 %676
        %s678 = scalar_lea.vmem %s3, 96
        %v679 = vld [vmem:[%s678] sm:$0xff]
        %v680 = vld [vmem:[%s678 + $0x8] sm:$0xff]
        %v681 = vld [vmem:[%s678 + $0x10] sm:$0xff]
        %v682 = vld [vmem:[%s678 + $0x18] sm:$0xff]
        %v684 = vsel %vm369, %v679, 0
        %v687 = vsel %vm369, %v680, 0
        %v690 = vsel %vm369, %v681, 0
        %v693 = vsel %vm369, %v682, 0
        %695 = vmatprep.subr.mxu0 0.0
        %696 = vmatpush1.msra.mxu0 0.0
        %697 = vmatprep.subr.mxu0 0.0
        %698 = vmatpush1.msra.mxu0 0.0
        %699 = vmatprep.subr.mxu0 0.0
        %700 = vmatpush1.msra.mxu0 0.0
        %701 = vmatprep.subr.mxu0 0.0
        %702 = vmatpush1.msra.mxu0 0.0
        %703 = vmatprep.subr.mxu0 0.0
        %704 = vmatpush1.msra.mxu0 0.0
        %705 = vmatprep.subr.mxu0 0.0
        %706 = vmatpush1.msra.mxu0 0.0
        %707 = vmatprep.subr.mxu0 0.0
        %708 = vmatpush1.msra.mxu0 0.0
        %709 = vmatprep.subr.mxu0 0.0
        %710 = vmatpush1.msra.mxu0 0.0
        %711 = vmatprep.subr.mxu0 0.0
        %712 = vmatpush1.msra.mxu0 0.0
        %713 = vmatprep.subr.mxu0 0.0
        %714 = vmatpush1.msra.mxu0 0.0
        %715 = vmatprep.subr.mxu0 0.0
        %716 = vmatpush1.msra.mxu0 0.0
        %717 = vmatprep.subr.mxu0 0.0
        %718 = vmatpush1.msra.mxu0 0.0
        %719 = vmatprep.subr.mxu0 0.0
        %720 = vmatpush1.msra.mxu0 %v677
        %721 = vmatprep.subr.mxu0 0.0
        %722 = vmatpush1.msra.mxu0 %v675
        %723 = vmatprep.subr.mxu0 0.0
        %724 = vmatpush1.msra.mxu0 %v673
        %725 = vmatprep.subr.mxu0 0.0
        %726 = vmatpush1.msra.mxu0 %v671
        %727 = vmatprep.subr.mxu0 0.0
        %728 = vmatpush2.msra.mxu0 0.0
        %729 = vmatprep.subr.mxu0 0.0
        %730 = vmatpush2.msra.mxu0 0.0
        %731 = vmatprep.subr.mxu0 0.0
        %732 = vmatpush2.msra.mxu0 0.0
        %733 = vmatprep.subr.mxu0 0.0
        %734 = vmatpush2.msra.mxu0 0.0
        %735 = vmatprep.subr.mxu0 0.0
        %736 = vmatpush2.msra.mxu0 0.0
        %737 = vmatprep.subr.mxu0 0.0
        %738 = vmatpush2.msra.mxu0 0.0
        %739 = vmatprep.subr.mxu0 0.0
        %740 = vmatpush2.msra.mxu0 0.0
        %741 = vmatprep.subr.mxu0 0.0
        %742 = vmatpush2.msra.mxu0 0.0
        %743 = vmatprep.subr.mxu0 0.0
        %744 = vmatpush2.msra.mxu0 0.0
        %745 = vmatprep.subr.mxu0 0.0
        %746 = vmatpush2.msra.mxu0 0.0
        %747 = vmatprep.subr.mxu0 0.0
        %748 = vmatpush2.msra.mxu0 0.0
        %749 = vmatprep.subr.mxu0 0.0
        %750 = vmatpush2.msra.mxu0 0.0
        %751 = vmatprep.subr.mxu0 0.0
        %752 = vmatpush2.msra.mxu0 0.0
        %753 = vmatprep.subr.mxu0 0.0
        %754 = vmatpush2.msra.mxu0 0.0
        %755 = vmatprep.subr.mxu0 0.0
        %756 = vmatpush2.msra.mxu0 0.0
        %757 = vmatprep.subr.mxu0 0.0
        %758 = vmatpush2.msra.mxu0 0.0
        %759 = vmatprep.mubr.f32.mxu0 0.0
        %760 = vmatmul.mubr.f32.gmra.mxu0 %v684
        %v761 = vpop.f32.mrf.mxu0
        %v762 = vadd.f32 0.0, %v761
        %v763 = vpop.f32.mrf.mxu0
        %764 = vmatprep.mubr.f32.mxu0 0.0
        %765 = vmatmul.mubr.f32.gmra.mxu0 %v687
        %v766 = vpop.f32.mrf.mxu0
        %v767 = vadd.f32 0.0, %v766
        %v768 = vpop.f32.mrf.mxu0
        %769 = vmatprep.mubr.f32.mxu0 0.0
        %770 = vmatmul.mubr.f32.gmra.mxu0 %v690
        %v771 = vpop.f32.mrf.mxu0
        %v772 = vadd.f32 0.0, %v771
        %v773 = vpop.f32.mrf.mxu0
        %774 = vmatprep.mubr.f32.mxu0 0.0
        %775 = vmatmul.mubr.f32.gmra.mxu0 %v693
        %v776 = vpop.f32.mrf.mxu0
        %v777 = vadd.f32 0.0, %v776
        %v778 = vpop.f32.mrf.mxu0
        %779 = vdwg.mxu0
        %v780 = vadd.f32 %v666, %v762
        %v781 = vadd.f32 %v667, %v767
        %v782 = vadd.f32 %v668, %v772
        %v783 = vadd.f32 %v669, %v777
        %784 = vrot.lane.b32.xlu0 %v340, 126
        %v785 = vpop.permute.xlu0 %784
        %786 = vrot.lane.b32.xlu0 %v341, 126
        %v787 = vpop.permute.xlu0 %786
        %788 = vrot.lane.b32.xlu0 %v342, 126
        %v789 = vpop.permute.xlu0 %788
        %790 = vrot.lane.b32.xlu0 %v343, 126
        %v791 = vpop.permute.xlu0 %790
        %s792 = scalar_lea.vmem %s3, 128
        %v793 = vld [vmem:[%s792] sm:$0xff]
        %v794 = vld [vmem:[%s792 + $0x8] sm:$0xff]
        %v795 = vld [vmem:[%s792 + $0x10] sm:$0xff]
        %v796 = vld [vmem:[%s792 + $0x18] sm:$0xff]
        %v798 = vsel %vm369, %v793, 0
        %v801 = vsel %vm369, %v794, 0
        %v804 = vsel %vm369, %v795, 0
        %v807 = vsel %vm369, %v796, 0
        %809 = vmatprep.subr.mxu0 0.0
        %810 = vmatpush1.msra.mxu0 0.0
        %811 = vmatprep.subr.mxu0 0.0
        %812 = vmatpush1.msra.mxu0 0.0
        %813 = vmatprep.subr.mxu0 0.0
        %814 = vmatpush1.msra.mxu0 0.0
        %815 = vmatprep.subr.mxu0 0.0
        %816 = vmatpush1.msra.mxu0 0.0
        %817 = vmatprep.subr.mxu0 0.0
        %818 = vmatpush1.msra.mxu0 0.0
        %819 = vmatprep.subr.mxu0 0.0
        %820 = vmatpush1.msra.mxu0 0.0
        %821 = vmatprep.subr.mxu0 0.0
        %822 = vmatpush1.msra.mxu0 0.0
        %823 = vmatprep.subr.mxu0 0.0
        %824 = vmatpush1.msra.mxu0 0.0
        %825 = vmatprep.subr.mxu0 0.0
        %826 = vmatpush1.msra.mxu0 0.0
        %827 = vmatprep.subr.mxu0 0.0
        %828 = vmatpush1.msra.mxu0 0.0
        %829 = vmatprep.subr.mxu0 0.0
        %830 = vmatpush1.msra.mxu0 0.0
        %831 = vmatprep.subr.mxu0 0.0
        %832 = vmatpush1.msra.mxu0 0.0
        %833 = vmatprep.subr.mxu0 0.0
        %834 = vmatpush1.msra.mxu0 %v791
        %835 = vmatprep.subr.mxu0 0.0
        %836 = vmatpush1.msra.mxu0 %v789
        %837 = vmatprep.subr.mxu0 0.0
        %838 = vmatpush1.msra.mxu0 %v787
        %839 = vmatprep.subr.mxu0 0.0
        %840 = vmatpush1.msra.mxu0 %v785
        %841 = vmatprep.subr.mxu0 0.0
        %842 = vmatpush2.msra.mxu0 0.0
        %843 = vmatprep.subr.mxu0 0.0
        %844 = vmatpush2.msra.mxu0 0.0
        %845 = vmatprep.subr.mxu0 0.0
        %846 = vmatpush2.msra.mxu0 0.0
        %847 = vmatprep.subr.mxu0 0.0
        %848 = vmatpush2.msra.mxu0 0.0
        %849 = vmatprep.subr.mxu0 0.0
        %850 = vmatpush2.msra.mxu0 0.0
        %851 = vmatprep.subr.mxu0 0.0
        %852 = vmatpush2.msra.mxu0 0.0
        %853 = vmatprep.subr.mxu0 0.0
        %854 = vmatpush2.msra.mxu0 0.0
        %855 = vmatprep.subr.mxu0 0.0
        %856 = vmatpush2.msra.mxu0 0.0
        %857 = vmatprep.subr.mxu0 0.0
        %858 = vmatpush2.msra.mxu0 0.0
        %859 = vmatprep.subr.mxu0 0.0
        %860 = vmatpush2.msra.mxu0 0.0
        %861 = vmatprep.subr.mxu0 0.0
        %862 = vmatpush2.msra.mxu0 0.0
        %863 = vmatprep.subr.mxu0 0.0
        %864 = vmatpush2.msra.mxu0 0.0
        %865 = vmatprep.subr.mxu0 0.0
        %866 = vmatpush2.msra.mxu0 0.0
        %867 = vmatprep.subr.mxu0 0.0
        %868 = vmatpush2.msra.mxu0 0.0
        %869 = vmatprep.subr.mxu0 0.0
        %870 = vmatpush2.msra.mxu0 0.0
        %871 = vmatprep.subr.mxu0 0.0
        %872 = vmatpush2.msra.mxu0 0.0
        %873 = vmatprep.mubr.f32.mxu0 0.0
        %874 = vmatmul.mubr.f32.gmra.mxu0 %v798
        %v875 = vpop.f32.mrf.mxu0
        %v876 = vadd.f32 0.0, %v875
        %v877 = vpop.f32.mrf.mxu0
        %878 = vmatprep.mubr.f32.mxu0 0.0
        %879 = vmatmul.mubr.f32.gmra.mxu0 %v801
        %v880 = vpop.f32.mrf.mxu0
        %v881 = vadd.f32 0.0, %v880
        %v882 = vpop.f32.mrf.mxu0
        %883 = vmatprep.mubr.f32.mxu0 0.0
        %884 = vmatmul.mubr.f32.gmra.mxu0 %v804
        %v885 = vpop.f32.mrf.mxu0
        %v886 = vadd.f32 0.0, %v885
        %v887 = vpop.f32.mrf.mxu0
        %888 = vmatprep.mubr.f32.mxu0 0.0
        %889 = vmatmul.mubr.f32.gmra.mxu0 %v807
        %v890 = vpop.f32.mrf.mxu0
        %v891 = vadd.f32 0.0, %v890
        %v892 = vpop.f32.mrf.mxu0
        %893 = vdwg.mxu0
        %v894 = vadd.f32 %v780, %v876
        %v895 = vadd.f32 %v781, %v881
        %v896 = vadd.f32 %v782, %v886
        %v897 = vadd.f32 %v783, %v891
        %v898 = vld [vmem:[%s4] sm:$0xff]
        %v899 = vld [vmem:[%s4 + $0x8] sm:$0xff]
        %v900 = vld [vmem:[%s4 + $0x10] sm:$0xff]
        %v901 = vld [vmem:[%s4 + $0x18] sm:$0xff]
        %903 = vset.pattern.permute.xlu0 0
        %904 = vperm.xlu0 %903, %v898
        %v905 = vpop.permute.xlu0 %904
        %908 = vset.pattern.permute.xlu0 0
        %909 = vperm.xlu0 %908, %v899
        %v910 = vpop.permute.xlu0 %909
        %913 = vset.pattern.permute.xlu0 0
        %914 = vperm.xlu0 %913, %v900
        %v915 = vpop.permute.xlu0 %914
        %918 = vset.pattern.permute.xlu0 0
        %919 = vperm.xlu0 %918, %v901
        %v920 = vpop.permute.xlu0 %919
        %v922 = vmul.f32 %v894, %v905
        %v923 = vmul.f32 %v895, %v910
        %v924 = vmul.f32 %v896, %v915
        %v925 = vmul.f32 %v897, %v920
        %v926 = vld [vmem:[%s5] sm:$0xff]
        %v927 = vld [vmem:[%s5 + $0x8] sm:$0xff]
        %v928 = vld [vmem:[%s5 + $0x10] sm:$0xff]
        %v929 = vld [vmem:[%s5 + $0x18] sm:$0xff]
        %931 = vset.pattern.permute.xlu0 0
        %932 = vperm.xlu0 %931, %v926
        %v933 = vpop.permute.xlu0 %932
        %936 = vset.pattern.permute.xlu0 0
        %937 = vperm.xlu0 %936, %v927
        %v938 = vpop.permute.xlu0 %937
        %941 = vset.pattern.permute.xlu0 0
        %942 = vperm.xlu0 %941, %v928
        %v943 = vpop.permute.xlu0 %942
        %946 = vset.pattern.permute.xlu0 0
        %947 = vperm.xlu0 %946, %v929
        %v948 = vpop.permute.xlu0 %947
        %v950 = vadd.f32 %v922, %v933
        %v951 = vadd.f32 %v923, %v938
        %v952 = vadd.f32 %v924, %v943
        %v953 = vadd.f32 %v925, %v948
        %v954 = vmax.f32 %v950, 0.0
        %v955 = vmax.f32 %v951, 0.0
        %v956 = vmax.f32 %v952, 0.0
        %v957 = vmax.f32 %v953, 0.0
        %958 = vrot.lane.b32.xlu0 %v954, 2
        %v959 = vpop.permute.xlu0 %958
        %960 = vrot.lane.b32.xlu0 %v955, 2
        %v961 = vpop.permute.xlu0 %960
        %962 = vrot.lane.b32.xlu0 %v956, 2
        %v963 = vpop.permute.xlu0 %962
        %964 = vrot.lane.b32.xlu0 %v957, 2
        %v965 = vpop.permute.xlu0 %964
        %v966 = vld [vmem:[%s6] sm:$0xff]
        %v967 = vld [vmem:[%s6 + $0x8] sm:$0xff]
        %v968 = vld [vmem:[%s6 + $0x10] sm:$0xff]
        %v969 = vld [vmem:[%s6 + $0x18] sm:$0xff]
        %970 = vrot.lane.b32.xlu0 %v954, 1
        %v971 = vpop.permute.xlu0 %970
        %972 = vrot.lane.b32.xlu0 %v955, 1
        %v973 = vpop.permute.xlu0 %972
        %974 = vrot.lane.b32.xlu0 %v956, 1
        %v975 = vpop.permute.xlu0 %974
        %976 = vrot.lane.b32.xlu0 %v957, 1
        %v977 = vpop.permute.xlu0 %976
        %s978 = scalar_lea.vmem %s6, 32
        %v979 = vld [vmem:[%s978] sm:$0xff]
        %v980 = vld [vmem:[%s978 + $0x8] sm:$0xff]
        %v981 = vld [vmem:[%s978 + $0x10] sm:$0xff]
        %v982 = vld [vmem:[%s978 + $0x18] sm:$0xff]
        %v984 = vsel %vm369, %v979, 0
        %v987 = vsel %vm369, %v980, 0
        %v990 = vsel %vm369, %v981, 0
        %v993 = vsel %vm369, %v982, 0
        %995 = vmatprep.subr.mxu0 0.0
        %996 = vmatpush1.msra.mxu0 0.0
        %997 = vmatprep.subr.mxu0 0.0
        %998 = vmatpush1.msra.mxu0 0.0
        %999 = vmatprep.subr.mxu0 0.0
        %1000 = vmatpush1.msra.mxu0 0.0
        %1001 = vmatprep.subr.mxu0 0.0
        %1002 = vmatpush1.msra.mxu0 0.0
        %1003 = vmatprep.subr.mxu0 0.0
        %1004 = vmatpush1.msra.mxu0 0.0
        %1005 = vmatprep.subr.mxu0 0.0
        %1006 = vmatpush1.msra.mxu0 0.0
        %1007 = vmatprep.subr.mxu0 0.0
        %1008 = vmatpush1.msra.mxu0 0.0
        %1009 = vmatprep.subr.mxu0 0.0
        %1010 = vmatpush1.msra.mxu0 0.0
        %1011 = vmatprep.subr.mxu0 0.0
        %1012 = vmatpush1.msra.mxu0 0.0
        %1013 = vmatprep.subr.mxu0 0.0
        %1014 = vmatpush1.msra.mxu0 0.0
        %1015 = vmatprep.subr.mxu0 0.0
        %1016 = vmatpush1.msra.mxu0 0.0
        %1017 = vmatprep.subr.mxu0 0.0
        %1018 = vmatpush1.msra.mxu0 0.0
        %1019 = vmatprep.subr.mxu0 0.0
        %1020 = vmatpush1.msra.mxu0 %v977
        %1021 = vmatprep.subr.mxu0 0.0
        %1022 = vmatpush1.msra.mxu0 %v975
        %1023 = vmatprep.subr.mxu0 0.0
        %1024 = vmatpush1.msra.mxu0 %v973
        %1025 = vmatprep.subr.mxu0 0.0
        %1026 = vmatpush1.msra.mxu0 %v971
        %1027 = vmatprep.subr.mxu0 0.0
        %1028 = vmatpush2.msra.mxu0 0.0
        %1029 = vmatprep.subr.mxu0 0.0
        %1030 = vmatpush2.msra.mxu0 0.0
        %1031 = vmatprep.subr.mxu0 0.0
        %1032 = vmatpush2.msra.mxu0 0.0
        %1033 = vmatprep.subr.mxu0 0.0
        %1034 = vmatpush2.msra.mxu0 0.0
        %1035 = vmatprep.subr.mxu0 0.0
        %1036 = vmatpush2.msra.mxu0 0.0
        %1037 = vmatprep.subr.mxu0 0.0
        %1038 = vmatpush2.msra.mxu0 0.0
        %1039 = vmatprep.subr.mxu0 0.0
        %1040 = vmatpush2.msra.mxu0 0.0
        %1041 = vmatprep.subr.mxu0 0.0
        %1042 = vmatpush2.msra.mxu0 0.0
        %1043 = vmatprep.subr.mxu0 0.0
        %1044 = vmatpush2.msra.mxu0 0.0
        %1045 = vmatprep.subr.mxu0 0.0
        %1046 = vmatpush2.msra.mxu0 0.0
        %1047 = vmatprep.subr.mxu0 0.0
        %1048 = vmatpush2.msra.mxu0 0.0
        %1049 = vmatprep.subr.mxu0 0.0
        %1050 = vmatpush2.msra.mxu0 0.0
        %1051 = vmatprep.subr.mxu0 0.0
        %1052 = vmatpush2.msra.mxu0 0.0
        %1053 = vmatprep.subr.mxu0 0.0
        %1054 = vmatpush2.msra.mxu0 0.0
        %1055 = vmatprep.subr.mxu0 0.0
        %1056 = vmatpush2.msra.mxu0 0.0
        %1057 = vmatprep.subr.mxu0 0.0
        %1058 = vmatpush2.msra.mxu0 0.0
        %1059 = vmatprep.mubr.f32.mxu0 0.0
        %1060 = vmatmul.mubr.f32.gmra.mxu0 %v984
        %v1061 = vpop.f32.mrf.mxu0
        %v1062 = vadd.f32 0.0, %v1061
        %v1063 = vpop.f32.mrf.mxu0
        %1064 = vmatprep.mubr.f32.mxu0 0.0
        %1065 = vmatmul.mubr.f32.gmra.mxu0 %v987
        %v1066 = vpop.f32.mrf.mxu0
        %v1067 = vadd.f32 0.0, %v1066
        %v1068 = vpop.f32.mrf.mxu0
        %1069 = vmatprep.mubr.f32.mxu0 0.0
        %1070 = vmatmul.mubr.f32.gmra.mxu0 %v990
        %v1071 = vpop.f32.mrf.mxu0
        %v1072 = vadd.f32 0.0, %v1071
        %v1073 = vpop.f32.mrf.mxu0
        %1074 = vmatprep.mubr.f32.mxu0 0.0
        %1075 = vmatmul.mubr.f32.gmra.mxu0 %v993
        %v1076 = vpop.f32.mrf.mxu0
        %v1077 = vadd.f32 0.0, %v1076
        %v1078 = vpop.f32.mrf.mxu0
        %1079 = vdwg.mxu0
        %v1081 = vsel %vm369, %v966, 0
        %v1084 = vsel %vm369, %v967, 0
        %v1087 = vsel %vm369, %v968, 0
        %v1090 = vsel %vm369, %v969, 0
        %1092 = vmatprep.subr.mxu0 0.0
        %1093 = vmatpush1.msra.mxu0 0.0
        %1094 = vmatprep.subr.mxu0 0.0
        %1095 = vmatpush1.msra.mxu0 0.0
        %1096 = vmatprep.subr.mxu0 0.0
        %1097 = vmatpush1.msra.mxu0 0.0
        %1098 = vmatprep.subr.mxu0 0.0
        %1099 = vmatpush1.msra.mxu0 0.0
        %1100 = vmatprep.subr.mxu0 0.0
        %1101 = vmatpush1.msra.mxu0 0.0
        %1102 = vmatprep.subr.mxu0 0.0
        %1103 = vmatpush1.msra.mxu0 0.0
        %1104 = vmatprep.subr.mxu0 0.0
        %1105 = vmatpush1.msra.mxu0 0.0
        %1106 = vmatprep.subr.mxu0 0.0
        %1107 = vmatpush1.msra.mxu0 0.0
        %1108 = vmatprep.subr.mxu0 0.0
        %1109 = vmatpush1.msra.mxu0 0.0
        %1110 = vmatprep.subr.mxu0 0.0
        %1111 = vmatpush1.msra.mxu0 0.0
        %1112 = vmatprep.subr.mxu0 0.0
        %1113 = vmatpush1.msra.mxu0 0.0
        %1114 = vmatprep.subr.mxu0 0.0
        %1115 = vmatpush1.msra.mxu0 0.0
        %1116 = vmatprep.subr.mxu0 0.0
        %1117 = vmatpush1.msra.mxu0 %v965
        %1118 = vmatprep.subr.mxu0 0.0
        %1119 = vmatpush1.msra.mxu0 %v963
        %1120 = vmatprep.subr.mxu0 0.0
        %1121 = vmatpush1.msra.mxu0 %v961
        %1122 = vmatprep.subr.mxu0 0.0
        %1123 = vmatpush1.msra.mxu0 %v959
        %1124 = vmatprep.subr.mxu0 0.0
        %1125 = vmatpush2.msra.mxu0 0.0
        %1126 = vmatprep.subr.mxu0 0.0
        %1127 = vmatpush2.msra.mxu0 0.0
        %1128 = vmatprep.subr.mxu0 0.0
        %1129 = vmatpush2.msra.mxu0 0.0
        %1130 = vmatprep.subr.mxu0 0.0
        %1131 = vmatpush2.msra.mxu0 0.0
        %1132 = vmatprep.subr.mxu0 0.0
        %1133 = vmatpush2.msra.mxu0 0.0
        %1134 = vmatprep.subr.mxu0 0.0
        %1135 = vmatpush2.msra.mxu0 0.0
        %1136 = vmatprep.subr.mxu0 0.0
        %1137 = vmatpush2.msra.mxu0 0.0
        %1138 = vmatprep.subr.mxu0 0.0
        %1139 = vmatpush2.msra.mxu0 0.0
        %1140 = vmatprep.subr.mxu0 0.0
        %1141 = vmatpush2.msra.mxu0 0.0
        %1142 = vmatprep.subr.mxu0 0.0
        %1143 = vmatpush2.msra.mxu0 0.0
        %1144 = vmatprep.subr.mxu0 0.0
        %1145 = vmatpush2.msra.mxu0 0.0
        %1146 = vmatprep.subr.mxu0 0.0
        %1147 = vmatpush2.msra.mxu0 0.0
        %1148 = vmatprep.subr.mxu0 0.0
        %1149 = vmatpush2.msra.mxu0 0.0
        %1150 = vmatprep.subr.mxu0 0.0
        %1151 = vmatpush2.msra.mxu0 0.0
        %1152 = vmatprep.subr.mxu0 0.0
        %1153 = vmatpush2.msra.mxu0 0.0
        %1154 = vmatprep.subr.mxu0 0.0
        %1155 = vmatpush2.msra.mxu0 0.0
        %1156 = vmatprep.mubr.f32.mxu0 0.0
        %1157 = vmatmul.mubr.f32.gmra.mxu0 %v1081
        %v1158 = vpop.f32.mrf.mxu0
        %v1159 = vadd.f32 %v1062, %v1158
        %v1160 = vpop.f32.mrf.mxu0
        %1161 = vmatprep.mubr.f32.mxu0 0.0
        %1162 = vmatmul.mubr.f32.gmra.mxu0 %v1084
        %v1163 = vpop.f32.mrf.mxu0
        %v1164 = vadd.f32 %v1067, %v1163
        %v1165 = vpop.f32.mrf.mxu0
        %1166 = vmatprep.mubr.f32.mxu0 0.0
        %1167 = vmatmul.mubr.f32.gmra.mxu0 %v1087
        %v1168 = vpop.f32.mrf.mxu0
        %v1169 = vadd.f32 %v1072, %v1168
        %v1170 = vpop.f32.mrf.mxu0
        %1171 = vmatprep.mubr.f32.mxu0 0.0
        %1172 = vmatmul.mubr.f32.gmra.mxu0 %v1090
        %v1173 = vpop.f32.mrf.mxu0
        %v1174 = vadd.f32 %v1077, %v1173
        %v1175 = vpop.f32.mrf.mxu0
        %1176 = vdwg.mxu0
        %s1177 = scalar_lea.vmem %s6, 64
        %v1178 = vld [vmem:[%s1177] sm:$0xff]
        %v1179 = vld [vmem:[%s1177 + $0x8] sm:$0xff]
        %v1180 = vld [vmem:[%s1177 + $0x10] sm:$0xff]
        %v1181 = vld [vmem:[%s1177 + $0x18] sm:$0xff]
        %v1183 = vsel %vm369, %v1178, 0
        %v1186 = vsel %vm369, %v1179, 0
        %v1189 = vsel %vm369, %v1180, 0
        %v1192 = vsel %vm369, %v1181, 0
        %1194 = vmatprep.subr.mxu0 0.0
        %1195 = vmatpush1.msra.mxu0 0.0
        %1196 = vmatprep.subr.mxu0 0.0
        %1197 = vmatpush1.msra.mxu0 0.0
        %1198 = vmatprep.subr.mxu0 0.0
        %1199 = vmatpush1.msra.mxu0 0.0
        %1200 = vmatprep.subr.mxu0 0.0
        %1201 = vmatpush1.msra.mxu0 0.0
        %1202 = vmatprep.subr.mxu0 0.0
        %1203 = vmatpush1.msra.mxu0 0.0
        %1204 = vmatprep.subr.mxu0 0.0
        %1205 = vmatpush1.msra.mxu0 0.0
        %1206 = vmatprep.subr.mxu0 0.0
        %1207 = vmatpush1.msra.mxu0 0.0
        %1208 = vmatprep.subr.mxu0 0.0
        %1209 = vmatpush1.msra.mxu0 0.0
        %1210 = vmatprep.subr.mxu0 0.0
        %1211 = vmatpush1.msra.mxu0 0.0
        %1212 = vmatprep.subr.mxu0 0.0
        %1213 = vmatpush1.msra.mxu0 0.0
        %1214 = vmatprep.subr.mxu0 0.0
        %1215 = vmatpush1.msra.mxu0 0.0
        %1216 = vmatprep.subr.mxu0 0.0
        %1217 = vmatpush1.msra.mxu0 0.0
        %1218 = vmatprep.subr.mxu0 0.0
        %1219 = vmatpush1.msra.mxu0 %v957
        %1220 = vmatprep.subr.mxu0 0.0
        %1221 = vmatpush1.msra.mxu0 %v956
        %1222 = vmatprep.subr.mxu0 0.0
        %1223 = vmatpush1.msra.mxu0 %v955
        %1224 = vmatprep.subr.mxu0 0.0
        %1225 = vmatpush1.msra.mxu0 %v954
        %1226 = vmatprep.subr.mxu0 0.0
        %1227 = vmatpush2.msra.mxu0 0.0
        %1228 = vmatprep.subr.mxu0 0.0
        %1229 = vmatpush2.msra.mxu0 0.0
        %1230 = vmatprep.subr.mxu0 0.0
        %1231 = vmatpush2.msra.mxu0 0.0
        %1232 = vmatprep.subr.mxu0 0.0
        %1233 = vmatpush2.msra.mxu0 0.0
        %1234 = vmatprep.subr.mxu0 0.0
        %1235 = vmatpush2.msra.mxu0 0.0
        %1236 = vmatprep.subr.mxu0 0.0
        %1237 = vmatpush2.msra.mxu0 0.0
        %1238 = vmatprep.subr.mxu0 0.0
        %1239 = vmatpush2.msra.mxu0 0.0
        %1240 = vmatprep.subr.mxu0 0.0
        %1241 = vmatpush2.msra.mxu0 0.0
        %1242 = vmatprep.subr.mxu0 0.0
        %1243 = vmatpush2.msra.mxu0 0.0
        %1244 = vmatprep.subr.mxu0 0.0
        %1245 = vmatpush2.msra.mxu0 0.0
        %1246 = vmatprep.subr.mxu0 0.0
        %1247 = vmatpush2.msra.mxu0 0.0
        %1248 = vmatprep.subr.mxu0 0.0
        %1249 = vmatpush2.msra.mxu0 0.0
        %1250 = vmatprep.subr.mxu0 0.0
        %1251 = vmatpush2.msra.mxu0 0.0
        %1252 = vmatprep.subr.mxu0 0.0
        %1253 = vmatpush2.msra.mxu0 0.0
        %1254 = vmatprep.subr.mxu0 0.0
        %1255 = vmatpush2.msra.mxu0 0.0
        %1256 = vmatprep.subr.mxu0 0.0
        %1257 = vmatpush2.msra.mxu0 0.0
        %1258 = vmatprep.mubr.f32.mxu0 0.0
        %1259 = vmatmul.mubr.f32.gmra.mxu0 %v1183
        %v1260 = vpop.f32.mrf.mxu0
        %v1261 = vadd.f32 0.0, %v1260
        %v1262 = vpop.f32.mrf.mxu0
        %1263 = vmatprep.mubr.f32.mxu0 0.0
        %1264 = vmatmul.mubr.f32.gmra.mxu0 %v1186
        %v1265 = vpop.f32.mrf.mxu0
        %v1266 = vadd.f32 0.0, %v1265
        %v1267 = vpop.f32.mrf.mxu0
        %1268 = vmatprep.mubr.f32.mxu0 0.0
        %1269 = vmatmul.mubr.f32.gmra.mxu0 %v1189
        %v1270 = vpop.f32.mrf.mxu0
        %v1271 = vadd.f32 0.0, %v1270
        %v1272 = vpop.f32.mrf.mxu0
        %1273 = vmatprep.mubr.f32.mxu0 0.0
        %1274 = vmatmul.mubr.f32.gmra.mxu0 %v1192
        %v1275 = vpop.f32.mrf.mxu0
        %v1276 = vadd.f32 0.0, %v1275
        %v1277 = vpop.f32.mrf.mxu0
        %1278 = vdwg.mxu0
        %v1279 = vadd.f32 %v1159, %v1261
        %v1280 = vadd.f32 %v1164, %v1266
        %v1281 = vadd.f32 %v1169, %v1271
        %v1282 = vadd.f32 %v1174, %v1276
        %1283 = vrot.lane.b32.xlu0 %v954, 127
        %v1284 = vpop.permute.xlu0 %1283
        %1285 = vrot.lane.b32.xlu0 %v955, 127
        %v1286 = vpop.permute.xlu0 %1285
        %1287 = vrot.lane.b32.xlu0 %v956, 127
        %v1288 = vpop.permute.xlu0 %1287
        %1289 = vrot.lane.b32.xlu0 %v957, 127
        %v1290 = vpop.permute.xlu0 %1289
        %s1291 = scalar_lea.vmem %s6, 96
        %v1292 = vld [vmem:[%s1291] sm:$0xff]
        %v1293 = vld [vmem:[%s1291 + $0x8] sm:$0xff]
        %v1294 = vld [vmem:[%s1291 + $0x10] sm:$0xff]
        %v1295 = vld [vmem:[%s1291 + $0x18] sm:$0xff]
        %v1297 = vsel %vm369, %v1292, 0
        %v1300 = vsel %vm369, %v1293, 0
        %v1303 = vsel %vm369, %v1294, 0
        %v1306 = vsel %vm369, %v1295, 0
        %1308 = vmatprep.subr.mxu0 0.0
        %1309 = vmatpush1.msra.mxu0 0.0
        %1310 = vmatprep.subr.mxu0 0.0
        %1311 = vmatpush1.msra.mxu0 0.0
        %1312 = vmatprep.subr.mxu0 0.0
        %1313 = vmatpush1.msra.mxu0 0.0
        %1314 = vmatprep.subr.mxu0 0.0
        %1315 = vmatpush1.msra.mxu0 0.0
        %1316 = vmatprep.subr.mxu0 0.0
        %1317 = vmatpush1.msra.mxu0 0.0
        %1318 = vmatprep.subr.mxu0 0.0
        %1319 = vmatpush1.msra.mxu0 0.0
        %1320 = vmatprep.subr.mxu0 0.0
        %1321 = vmatpush1.msra.mxu0 0.0
        %1322 = vmatprep.subr.mxu0 0.0
        %1323 = vmatpush1.msra.mxu0 0.0
        %1324 = vmatprep.subr.mxu0 0.0
        %1325 = vmatpush1.msra.mxu0 0.0
        %1326 = vmatprep.subr.mxu0 0.0
        %1327 = vmatpush1.msra.mxu0 0.0
        %1328 = vmatprep.subr.mxu0 0.0
        %1329 = vmatpush1.msra.mxu0 0.0
        %1330 = vmatprep.subr.mxu0 0.0
        %1331 = vmatpush1.msra.mxu0 0.0
        %1332 = vmatprep.subr.mxu0 0.0
        %1333 = vmatpush1.msra.mxu0 %v1290
        %1334 = vmatprep.subr.mxu0 0.0
        %1335 = vmatpush1.msra.mxu0 %v1288
        %1336 = vmatprep.subr.mxu0 0.0
        %1337 = vmatpush1.msra.mxu0 %v1286
        %1338 = vmatprep.subr.mxu0 0.0
        %1339 = vmatpush1.msra.mxu0 %v1284
        %1340 = vmatprep.subr.mxu0 0.0
        %1341 = vmatpush2.msra.mxu0 0.0
        %1342 = vmatprep.subr.mxu0 0.0
        %1343 = vmatpush2.msra.mxu0 0.0
        %1344 = vmatprep.subr.mxu0 0.0
        %1345 = vmatpush2.msra.mxu0 0.0
        %1346 = vmatprep.subr.mxu0 0.0
        %1347 = vmatpush2.msra.mxu0 0.0
        %1348 = vmatprep.subr.mxu0 0.0
        %1349 = vmatpush2.msra.mxu0 0.0
        %1350 = vmatprep.subr.mxu0 0.0
        %1351 = vmatpush2.msra.mxu0 0.0
        %1352 = vmatprep.subr.mxu0 0.0
        %1353 = vmatpush2.msra.mxu0 0.0
        %1354 = vmatprep.subr.mxu0 0.0
        %1355 = vmatpush2.msra.mxu0 0.0
        %1356 = vmatprep.subr.mxu0 0.0
        %1357 = vmatpush2.msra.mxu0 0.0
        %1358 = vmatprep.subr.mxu0 0.0
        %1359 = vmatpush2.msra.mxu0 0.0
        %1360 = vmatprep.subr.mxu0 0.0
        %1361 = vmatpush2.msra.mxu0 0.0
        %1362 = vmatprep.subr.mxu0 0.0
        %1363 = vmatpush2.msra.mxu0 0.0
        %1364 = vmatprep.subr.mxu0 0.0
        %1365 = vmatpush2.msra.mxu0 0.0
        %1366 = vmatprep.subr.mxu0 0.0
        %1367 = vmatpush2.msra.mxu0 0.0
        %1368 = vmatprep.subr.mxu0 0.0
        %1369 = vmatpush2.msra.mxu0 0.0
        %1370 = vmatprep.subr.mxu0 0.0
        %1371 = vmatpush2.msra.mxu0 0.0
        %1372 = vmatprep.mubr.f32.mxu0 0.0
        %1373 = vmatmul.mubr.f32.gmra.mxu0 %v1297
        %v1374 = vpop.f32.mrf.mxu0
        %v1375 = vadd.f32 0.0, %v1374
        %v1376 = vpop.f32.mrf.mxu0
        %1377 = vmatprep.mubr.f32.mxu0 0.0
        %1378 = vmatmul.mubr.f32.gmra.mxu0 %v1300
        %v1379 = vpop.f32.mrf.mxu0
        %v1380 = vadd.f32 0.0, %v1379
        %v1381 = vpop.f32.mrf.mxu0
        %1382 = vmatprep.mubr.f32.mxu0 0.0
        %1383 = vmatmul.mubr.f32.gmra.mxu0 %v1303
        %v1384 = vpop.f32.mrf.mxu0
        %v1385 = vadd.f32 0.0, %v1384
        %v1386 = vpop.f32.mrf.mxu0
        %1387 = vmatprep.mubr.f32.mxu0 0.0
        %1388 = vmatmul.mubr.f32.gmra.mxu0 %v1306
        %v1389 = vpop.f32.mrf.mxu0
        %v1390 = vadd.f32 0.0, %v1389
        %v1391 = vpop.f32.mrf.mxu0
        %1392 = vdwg.mxu0
        %v1393 = vadd.f32 %v1279, %v1375
        %v1394 = vadd.f32 %v1280, %v1380
        %v1395 = vadd.f32 %v1281, %v1385
        %v1396 = vadd.f32 %v1282, %v1390
        %1397 = vrot.lane.b32.xlu0 %v954, 126
        %v1398 = vpop.permute.xlu0 %1397
        %1399 = vrot.lane.b32.xlu0 %v955, 126
        %v1400 = vpop.permute.xlu0 %1399
        %1401 = vrot.lane.b32.xlu0 %v956, 126
        %v1402 = vpop.permute.xlu0 %1401
        %1403 = vrot.lane.b32.xlu0 %v957, 126
        %v1404 = vpop.permute.xlu0 %1403
        %s1405 = scalar_lea.vmem %s6, 128
        %v1406 = vld [vmem:[%s1405] sm:$0xff]
        %v1407 = vld [vmem:[%s1405 + $0x8] sm:$0xff]
        %v1408 = vld [vmem:[%s1405 + $0x10] sm:$0xff]
        %v1409 = vld [vmem:[%s1405 + $0x18] sm:$0xff]
        %v1411 = vsel %vm369, %v1406, 0
        %v1414 = vsel %vm369, %v1407, 0
        %v1417 = vsel %vm369, %v1408, 0
        %v1420 = vsel %vm369, %v1409, 0
        %1422 = vmatprep.subr.mxu0 0.0
        %1423 = vmatpush1.msra.mxu0 0.0
        %1424 = vmatprep.subr.mxu0 0.0
        %1425 = vmatpush1.msra.mxu0 0.0
        %1426 = vmatprep.subr.mxu0 0.0
        %1427 = vmatpush1.msra.mxu0 0.0
        %1428 = vmatprep.subr.mxu0 0.0
        %1429 = vmatpush1.msra.mxu0 0.0
        %1430 = vmatprep.subr.mxu0 0.0
        %1431 = vmatpush1.msra.mxu0 0.0
        %1432 = vmatprep.subr.mxu0 0.0
        %1433 = vmatpush1.msra.mxu0 0.0
        %1434 = vmatprep.subr.mxu0 0.0
        %1435 = vmatpush1.msra.mxu0 0.0
        %1436 = vmatprep.subr.mxu0 0.0
        %1437 = vmatpush1.msra.mxu0 0.0
        %1438 = vmatprep.subr.mxu0 0.0
        %1439 = vmatpush1.msra.mxu0 0.0
        %1440 = vmatprep.subr.mxu0 0.0
        %1441 = vmatpush1.msra.mxu0 0.0
        %1442 = vmatprep.subr.mxu0 0.0
        %1443 = vmatpush1.msra.mxu0 0.0
        %1444 = vmatprep.subr.mxu0 0.0
        %1445 = vmatpush1.msra.mxu0 0.0
        %1446 = vmatprep.subr.mxu0 0.0
        %1447 = vmatpush1.msra.mxu0 %v1404
        %1448 = vmatprep.subr.mxu0 0.0
        %1449 = vmatpush1.msra.mxu0 %v1402
        %1450 = vmatprep.subr.mxu0 0.0
        %1451 = vmatpush1.msra.mxu0 %v1400
        %1452 = vmatprep.subr.mxu0 0.0
        %1453 = vmatpush1.msra.mxu0 %v1398
        %1454 = vmatprep.subr.mxu0 0.0
        %1455 = vmatpush2.msra.mxu0 0.0
        %1456 = vmatprep.subr.mxu0 0.0
        %1457 = vmatpush2.msra.mxu0 0.0
        %1458 = vmatprep.subr.mxu0 0.0
        %1459 = vmatpush2.msra.mxu0 0.0
        %1460 = vmatprep.subr.mxu0 0.0
        %1461 = vmatpush2.msra.mxu0 0.0
        %1462 = vmatprep.subr.mxu0 0.0
        %1463 = vmatpush2.msra.mxu0 0.0
        %1464 = vmatprep.subr.mxu0 0.0
        %1465 = vmatpush2.msra.mxu0 0.0
        %1466 = vmatprep.subr.mxu0 0.0
        %1467 = vmatpush2.msra.mxu0 0.0
        %1468 = vmatprep.subr.mxu0 0.0
        %1469 = vmatpush2.msra.mxu0 0.0
        %1470 = vmatprep.subr.mxu0 0.0
        %1471 = vmatpush2.msra.mxu0 0.0
        %1472 = vmatprep.subr.mxu0 0.0
        %1473 = vmatpush2.msra.mxu0 0.0
        %1474 = vmatprep.subr.mxu0 0.0
        %1475 = vmatpush2.msra.mxu0 0.0
        %1476 = vmatprep.subr.mxu0 0.0
        %1477 = vmatpush2.msra.mxu0 0.0
        %1478 = vmatprep.subr.mxu0 0.0
        %1479 = vmatpush2.msra.mxu0 0.0
        %1480 = vmatprep.subr.mxu0 0.0
        %1481 = vmatpush2.msra.mxu0 0.0
        %1482 = vmatprep.subr.mxu0 0.0
        %1483 = vmatpush2.msra.mxu0 0.0
        %1484 = vmatprep.subr.mxu0 0.0
        %1485 = vmatpush2.msra.mxu0 0.0
        %1486 = vmatprep.mubr.f32.mxu0 0.0
        %1487 = vmatmul.mubr.f32.gmra.mxu0 %v1411
        %v1488 = vpop.f32.mrf.mxu0
        %v1489 = vadd.f32 0.0, %v1488
        %v1490 = vpop.f32.mrf.mxu0
        %1491 = vmatprep.mubr.f32.mxu0 0.0
        %1492 = vmatmul.mubr.f32.gmra.mxu0 %v1414
        %v1493 = vpop.f32.mrf.mxu0
        %v1494 = vadd.f32 0.0, %v1493
        %v1495 = vpop.f32.mrf.mxu0
        %1496 = vmatprep.mubr.f32.mxu0 0.0
        %1497 = vmatmul.mubr.f32.gmra.mxu0 %v1417
        %v1498 = vpop.f32.mrf.mxu0
        %v1499 = vadd.f32 0.0, %v1498
        %v1500 = vpop.f32.mrf.mxu0
        %1501 = vmatprep.mubr.f32.mxu0 0.0
        %1502 = vmatmul.mubr.f32.gmra.mxu0 %v1420
        %v1503 = vpop.f32.mrf.mxu0
        %v1504 = vadd.f32 0.0, %v1503
        %v1505 = vpop.f32.mrf.mxu0
        %1506 = vdwg.mxu0
        %v1507 = vadd.f32 %v1393, %v1489
        %v1508 = vadd.f32 %v1394, %v1494
        %v1509 = vadd.f32 %v1395, %v1499
        %v1510 = vadd.f32 %v1396, %v1504
        %v1511 = vadd.f32 %v1507, %v280
        %v1512 = vadd.f32 %v1508, %v281
        %v1513 = vadd.f32 %v1509, %v282
        %v1514 = vadd.f32 %v1510, %v283
        %1515 = vst [vmem:[%s272] sm:$0xff] %v1511
        %1516 = vst [vmem:[%s272 + $0x8] sm:$0xff] %v1512
        %1517 = vst [vmem:[%s272 + $0x10] sm:$0xff] %v1513
        %1518 = vst [vmem:[%s272 + $0x18] sm:$0xff] %v1514
        %s1519 = sand.u32 %s181, 1
        %s1520 = scalar_lea.sflag [#allocation3], %s1519
        %s1521 = sand.u32 %s181, 1
        %s1522 = smul.addr %s1521, 32
        %s1523 = scalar_lea.vmem [#allocation2], %s1522
        // Predicated region
        $region49: #{_lambda_.1} parent=47 // pred_check
          %p1524 = pneg %p191
        $region50: #{_lambda_.1} parent=47 // pred_check_branch
          %1526 = sbr.rel (%p1524) target = $region52
        $region51: #{_lambda_.1} parent=47 // pred_region
          %s1527 = smul.u32 4, %s21
          %s1529 = ssub.s32 512, 512
          %1530 = vsyncadd %s1520, %s1529
          %s1531 = smul.addr %s1527, 128
          %s1532 = scalar_lea.hbm %s7, %s1531
          %s1533 = sshll.u32 %s1523, 4
          %s1534 = int_to_ptr.vmem [resolvable:$true] %s1533
          %1539 = dma.vmem_to_hbm [thread:$0]  %s1534, 512, %s1532, %s1520, 128, 128, 8
        $region52: #{_lambda_.1} parent=47 // pred_fallthru
          _
      $region48: #{_lambda_.1} parent=5 // pred_fallthru
        _
      %p1540 = scmp.le.s32.totalorder 2, %s16
      // Predicated region
      $region53: #{_lambda_.1} parent=5 // pred_check
        %p1541 = pneg %p1540
      $region54: #{_lambda_.1} parent=5 // pred_check_branch
        %1543 = sbr.rel (%p1541) target = $region56
      $region55: #{_lambda_.1} parent=5 // pred_region
        %s1544 = ssub.s32 %s16, 2
        // Predicated region
        $region57: #{_lambda_.1} parent=55 // pred_check
          %p1545 = pneg %p197
        $region58: #{_lambda_.1} parent=55 // pred_check_branch
          %1547 = sbr.rel (%p1545) target = $region60
        $region59: #{_lambda_.1} parent=55 // pred_region
          %s1548 = sand.u32 %s182, 1
          %s1549 = scalar_lea.sflag [#allocation3], %s1548
          %s1550 = sand.u32 %s182, 1
          %s1551 = smul.addr %s1550, 32
          %s1552 = scalar_lea.vmem [#allocation2], %s1551
          %1553 = dma.done %s1549, 512
        $region60: #{_lambda_.1} parent=55 // pred_fallthru
          _
      $region56: #{_lambda_.1} parent=5 // pred_fallthru
        _
    $region6: #{_lambda_.1} parent=1 // loop_footer
      %s20 = sadd.s32 1, %s16
    $region7: #{_lambda_.1} parent=1 // loop_footer_branch
      %15 = sbr.rel target = $region3
    $region8: #{_lambda_.1} parent=1 // loop_exit
      _
    %1554 = vsyncpa [#allocation3], 1
    %s1555 = scalar_lea.sflag [#allocation3], 1
    %1556 = vsyncpa %s1555, 1

</llo_original>
